<compile_context>
chip_gen: v7x
topology: tpu7x:2x2x1
jax: 0.10.0
libtpu: 0.0.40
codegen_flags: <defaults>
</compile_context>

<pallas_src>
import functools
import numpy as np

import jax
import jax.numpy as jnp
from jax.experimental import pallas as pl
from jax.experimental.pallas import tpu as pltpu


# ----------------------------- model config ---------------------------------
VOCAB_SIZE = 19            # opt.vocab_size  -> logits over vocab_size + 1 = 20
INPUT_ENC = 32             # opt.input_encoding_size
RNN_SIZE = 32              # opt.rnn_size
NUM_LAYERS = 2             # opt.num_layers
FC_FEAT = 64               # opt.fc_feat_size
SEQ_LEN = 8                # seq.size(1) used in forward()
BATCH = 4
VP1 = VOCAB_SIZE + 1


# ------------------------------ Pallas kernel --------------------------------
def _show_tell_kernel(T, L, B, E, H, Vp1,
                      fc_ref, tok_ref, wimg_ref, bimg_ref, emb_ref, *refs):
    """Whole decoder loop in one kernel invocation (T unrolled statically).

    refs layout:
      refs[0:L]    per-layer fused LSTM weight [W_ih ; W_hh], shape (E+H, 4H) bf16
      refs[L]      w_logit  (H, Vp1)  f32
      refs[L+1]    b_logit  (1, Vp1)  f32
      refs[L+2]    out_ref  (B, T-1, Vp1)  log-probs for steps t = 1..T-1
      refs[L+3]    hid_ref  (T-1, B, H)    top-layer hidden for t = 1..T-1
    """
    w_lstm_refs = refs[:L]
    wlog_ref = refs[L]
    blog_ref = refs[L + 1]
    out_ref = refs[L + 2]
    hid_ref = refs[L + 3]

    f32 = jnp.float32
    bf16 = jnp.bfloat16

    # ---- Hoisted loads (once, before the unrolled loop) ----------------------
    w_l = [w_lstm_refs[l][...] for l in range(L)]     # (E+H, 4H) bf16 each
    emb = emb_ref[...]                                # (Vp1, E) bf16
    wimg = wimg_ref[...]                              # (F, E)  bf16
    bimg = bimg_ref[...]                              # (1, E)  f32
    wlog = wlog_ref[...]                              # (H, Vp1) f32
    blog = blog_ref[...]                              # (1, Vp1) f32
    tok = tok_ref[...]                                # ((T-1)*B, 1) i32 time-major

    # ---- Hoisted token embedding for ALL T-1 steps: one MXU push -------------
    rows = (T - 1) * B
    lane_iota = jax.lax.broadcasted_iota(jnp.int32, (rows, Vp1), 1)
    onehot = jnp.where(lane_iota == tok, f32(1.0), f32(0.0)).astype(bf16)
    # ((T-1)*B, E), time-major: rows (t-1)*B .. t*B-1 are the step-t inputs.
    emb_tm = jnp.dot(onehot, emb, preferred_element_type=f32)

    # ---- t == 0 input: img_embed(fc_feats), computed exactly once ------------
    xt0 = jnp.dot(fc_ref[...].astype(bf16), wimg, preferred_element_type=f32) + bimg

    # ---- LSTM recurrence, fully unrolled, state in registers -----------------
    h = [jnp.zeros((B, H), f32) for _ in range(L)]
    c = [jnp.zeros((B, H), f32) for _ in range(L)]
    h_tops = []

    for t in range(T):
        if t == 0:
            xt = xt0
        else:
            xt = emb_tm[(t - 1) * B:t * B, :]                       # (B, E)

        x = xt
        for l in range(L):
            # Single fused matmul per layer/step: [x, h] @ [W_ih ; W_hh].
            xh = jnp.concatenate([x, h[l]], axis=-1).astype(bf16)   # (B, E+H)
            gates = jnp.dot(xh, w_l[l], preferred_element_type=f32)  # (B, 4H)
            # Full-width activations (2 EUP passes), then 32-lane gate slices.
            sig = jax.nn.sigmoid(gates)
            tnh = jnp.tanh(gates)
            i_g = sig[:, 0 * H:1 * H]
            f_g = sig[:, 1 * H:2 * H]
            g_g = tnh[:, 2 * H:3 * H]
            o_g = sig[:, 3 * H:4 * H]
            c_new = f_g * c[l] + i_g * g_g
            h_new = o_g * jnp.tanh(c_new)
            c[l] = c_new
            h[l] = h_new
            x = h_new                                   # input to next layer

        if t >= 1:                                      # t=0 outputs discarded
            h_tops.append(x)

    # ---- Batched logit + log_softmax for all T-1 steps (off the recurrence) --
    hcat = jnp.concatenate(h_tops, axis=0)                           # (rows, H)
    logits = jnp.dot(hcat, wlog, preferred_element_type=f32) + blog  # (rows, Vp1)
    m = jnp.max(logits, axis=-1, keepdims=True)
    z = logits - m
    logp = z - jnp.log(jnp.sum(jnp.exp(z), axis=-1, keepdims=True))

    # ---- Stores: outputs directly in (B, T-1, Vp1); hiddens (T-1, B, H) ------
    for idx in range(T - 1):
        hid_ref[idx] = h_tops[idx]
        out_ref[:, idx, :] = logp[idx * B:(idx + 1) * B, :]


# ------------------------------ wrapper ---------------------------------------
def _full_spec(shape):
    nd = len(shape)
    return pl.BlockSpec(shape, lambda i, _nd=nd: (0,) * _nd)


def prepare_params(params):
    """One-time host-side weight prep (cache; do NOT redo per forward call)."""
    L, E, H = NUM_LAYERS, INPUT_ENC, RNN_SIZE
    assert E == H, "fused [W_ih;W_hh] prep assumes input_encoding_size == rnn_size"
    w_lstm = [
        jnp.concatenate([params[f"w_ih_{l}"], params[f"w_hh_{l}"]],
                        axis=0).astype(jnp.bfloat16)          # (E+H, 4H)
        for l in range(L)
    ]
    return {
        "w_img": params["w_img"].astype(jnp.bfloat16),        # (F, E)
        "b_img": params["b_img"],                             # (1, E) f32
        "embed": params["embed"].astype(jnp.bfloat16),        # (Vp1, E)
        "w_lstm": w_lstm,                                     # list of (E+H, 4H)
        "w_logit": params["w_logit"],                         # (H, Vp1) f32
        "b_logit": params["b_logit"],                         # (1, Vp1) f32
    }


def show_tell_forward(fc_feats, seq, prep):
    """Replicates ShowTellModel_vsemle.forward (eval mode), full T steps.

    jit-compatible: no host syncs. Returns:
      outputs : (B, T-1, vocab+1)   log-probs
      hiddens : (1, T-1, B, rnn_size)
    The data-dependent `break` in the torch code is applied by slicing these
    outside (later steps never affect earlier outputs).
    """
    B = fc_feats.shape[0]
    T = seq.shape[1]
    L, E, H, Vp1 = NUM_LAYERS, INPUT_ENC, RNN_SIZE, VP1
    assert T >= 2

    # Tokens used at steps t=1..T-1, pre-transposed to time-major ((T-1)*B, 1).
    tok_tm = jnp.transpose(seq[:, :T - 1].astype(jnp.int32)).reshape((T - 1) * B, 1)

    inputs = ([fc_feats, tok_tm, prep["w_img"], prep["b_img"], prep["embed"]]
              + list(prep["w_lstm"]) + [prep["w_logit"], prep["b_logit"]])
    in_specs = [_full_spec(x.shape) for x in inputs]

    out_shapes = (jax.ShapeDtypeStruct((B, T - 1, Vp1), jnp.float32),
                  jax.ShapeDtypeStruct((T - 1, B, H), jnp.float32))
    out_specs = [_full_spec(s.shape) for s in out_shapes]

    kernel = functools.partial(_show_tell_kernel, T, L, B, E, H, Vp1)

    grid_spec = pltpu.PrefetchScalarGridSpec(
        num_scalar_prefetch=0,
        grid=(1,),                     # single invocation; loop is in-kernel
        in_specs=in_specs,
        out_specs=out_specs,
    )

    out_all, hid_all = pl.pallas_call(
        kernel,
        out_shape=out_shapes,
        grid_spec=grid_spec,
        compiler_params=pltpu.CompilerParams(
            dimension_semantics=("arbitrary",)),
    )(*inputs)

    # outputs already (B, T-1, Vp1); hiddens (1, T-1, B, H) via free leading expand.
    return out_all, hid_all[None]


def effective_length(seq_np):
    """Host-side replica of the torch `break` condition (seq is concrete data)."""
    T = seq_np.shape[1]
    for i in range(T):
        if i >= 2 and int(seq_np[:, i - 1].sum()) == 0:
            return i
    return T


# ------------------------- deterministic parameters ---------------------------
def init_params(key):
    ks = jax.random.split(key, 8 + 2 * NUM_LAYERS)
    initrange = 0.1
    params = {
        # img_embed: nn.Linear(FC_FEAT, INPUT_ENC)  (stored pre-transposed)
        "w_img": jax.random.uniform(ks[0], (FC_FEAT, INPUT_ENC),
                                    minval=-0.1, maxval=0.1, dtype=jnp.float32),
        "b_img": jax.random.uniform(ks[1], (1, INPUT_ENC),
                                    minval=-0.1, maxval=0.1, dtype=jnp.float32),
        # embed: nn.Embedding(VOCAB+1, INPUT_ENC), uniform(-0.1, 0.1)
        "embed": jax.random.uniform(ks[2], (VP1, INPUT_ENC),
                                    minval=-initrange, maxval=initrange,
                                    dtype=jnp.float32),
        # logit: nn.Linear(RNN_SIZE, VOCAB+1), weight uniform(-0.1,0.1), bias 0
        "w_logit": jax.random.uniform(ks[3], (RNN_SIZE, VP1),
                                      minval=-initrange, maxval=initrange,
                                      dtype=jnp.float32),
        "b_logit": jnp.zeros((1, VP1), jnp.float32),
    }
    # nn.LSTM(INPUT_ENC, RNN_SIZE, NUM_LAYERS, bias=False); stored as (in, 4H)
    # with gate-column order [i | f | g | o] (PyTorch order).
    for l in range(NUM_LAYERS):
        in_l = INPUT_ENC if l == 0 else RNN_SIZE
        params[f"w_ih_{l}"] = jax.random.uniform(
            ks[4 + 2 * l], (in_l, 4 * RNN_SIZE),
            minval=-0.1, maxval=0.1, dtype=jnp.float32)
        params[f"w_hh_{l}"] = jax.random.uniform(
            ks[5 + 2 * l], (RNN_SIZE, 4 * RNN_SIZE),
            minval=-0.1, maxval=0.1, dtype=jnp.float32)
    return params


# ------------------------------ pure-JAX reference ----------------------------
def reference_forward(fc_feats, seq, params, T_eff):
    B = fc_feats.shape[0]
    L, H = NUM_LAYERS, RNN_SIZE
    h = jnp.zeros((L, B, H), jnp.float32)
    c = jnp.zeros((L, B, H), jnp.float32)
    outs, hids = [], []
    for t in range(T_eff):
        if t == 0:
            xt = fc_feats @ params["w_img"] + params["b_img"]
        else:
            xt = params["embed"][seq[:, t - 1]]
        x = xt
        for l in range(L):
            gates = x @ params[f"w_ih_{l}"] + h[l] @ params[f"w_hh_{l}"]
            i_g = jax.nn.sigmoid(gates[:, 0 * H:1 * H])
            f_g = jax.nn.sigmoid(gates[:, 1 * H:2 * H])
            g_g = jnp.tanh(gates[:, 2 * H:3 * H])
            o_g = jax.nn.sigmoid(gates[:, 3 * H:4 * H])
            c_new = f_g * c[l] + i_g * g_g
            h_new = o_g * jnp.tanh(c_new)
            h = h.at[l].set(h_new)
            c = c.at[l].set(c_new)
            x = h_new
        hids.append(x)
        logits = x @ params["w_logit"] + params["b_logit"]
        outs.append(jax.nn.log_softmax(logits, axis=-1))
    outputs = jnp.stack(outs[1:], axis=1)
    hiddens = jnp.stack(hids[1:], axis=0)[None]
    return outputs, hiddens


# ----------------------------------- main --------------------------------------
if __name__ == "__main__":
    key = jax.random.PRNGKey(0)
    k_param, k_fc, k_seq = jax.random.split(key, 3)

    params = init_params(k_param)
    prep = prepare_params(params)          # cached once, reused every forward
    fc_feats = jax.random.normal(k_fc, (BATCH, FC_FEAT), dtype=jnp.float32)
    # tokens in [1, VOCAB] so the `break` branch is not taken for this input
    seq = jax.random.randint(k_seq, (BATCH, SEQ_LEN), 1, VOCAB_SIZE + 1,
                             dtype=jnp.int32)
    # TODO(synk): training-time scheduled sampling (ss_prob>0, torch.multinomial)
    # is stochastic host-side logic and is not reproduced (ss_prob == 0.0 here).
    # TODO(synk): on v7x the second TensorCore idles for this latency-bound
    # recurrent kernel; feed it independent requests (2 per call with a
    # "parallel" leading grid axis) rather than splitting this tiny batch.

    fwd = jax.jit(show_tell_forward)
    outputs_full, hiddens_full = fwd(fc_feats, seq, prep)
    jax.block_until_ready((outputs_full, hiddens_full))

    # Data-dependent early `break` of the torch forward, resolved host-side on
    # the concrete demo input (no-op here since all tokens are nonzero).
    T_eff = effective_length(np.asarray(seq))
    assert T_eff >= 2, "need at least 2 decoding steps (outputs[1:])"
    outputs = outputs_full[:, :T_eff - 1]
    hiddens = hiddens_full[:, :T_eff - 1]

    ref_out, ref_hid = reference_forward(fc_feats, seq, params, T_eff)
    # bf16 MXU inputs on the recurrence path -> relaxed tolerance vs f32 ref.
    np.testing.assert_allclose(np.asarray(outputs), np.asarray(ref_out),
                               rtol=2e-2, atol=2e-2)
    np.testing.assert_allclose(np.asarray(hiddens), np.asarray(ref_hid),
                               rtol=2e-2, atol=2e-2)

    assert outputs.shape == (BATCH, T_eff - 1, VP1)
    assert hiddens.shape == (1, T_eff - 1, BATCH, RNN_SIZE)
    print("KERNEL_OK")
</pallas_src>

<mosaic_0001>
module attributes {stable_mosaic.version = 11 : i64} {
  func.func @_show_tell_kernel(%arg0: i32, %arg1: memref<4x64xf32, #tpu.memory_space<vmem>>, %arg2: memref<28x1xi32, #tpu.memory_space<vmem>>, %arg3: memref<64x32xbf16, #tpu.memory_space<vmem>>, %arg4: memref<1x32xf32, #tpu.memory_space<vmem>>, %arg5: memref<20x32xbf16, #tpu.memory_space<vmem>>, %arg6: memref<64x128xbf16, #tpu.memory_space<vmem>>, %arg7: memref<64x128xbf16, #tpu.memory_space<vmem>>, %arg8: memref<32x20xf32, #tpu.memory_space<vmem>>, %arg9: memref<1x20xf32, #tpu.memory_space<vmem>>, %arg10: memref<4x7x20xf32, #tpu.memory_space<vmem>>, %arg11: memref<7x4x32xf32, #tpu.memory_space<vmem>>) attributes {dimension_semantics = [#tpu.dimension_semantics<arbitrary>], iteration_bounds = array<i64: 1>, scalar_prefetch = 0 : i64, scratch_operands = 0 : i64, tpu.core_type = #tpu.core_type<tc>, window_params = [{pipeline_mode = #tpu.pipeline_mode<synchronous>, transform_indices = @transform_0, window_bounds = array<i64: 4, 64>}, {pipeline_mode = #tpu.pipeline_mode<synchronous>, transform_indices = @transform_1, window_bounds = array<i64: 28, 1>}, {pipeline_mode = #tpu.pipeline_mode<synchronous>, transform_indices = @transform_2, window_bounds = array<i64: 64, 32>}, {pipeline_mode = #tpu.pipeline_mode<synchronous>, transform_indices = @transform_3, window_bounds = array<i64: 1, 32>}, {pipeline_mode = #tpu.pipeline_mode<synchronous>, transform_indices = @transform_4, window_bounds = array<i64: 20, 32>}, {pipeline_mode = #tpu.pipeline_mode<synchronous>, transform_indices = @transform_5, window_bounds = array<i64: 64, 128>}, {pipeline_mode = #tpu.pipeline_mode<synchronous>, transform_indices = @transform_6, window_bounds = array<i64: 64, 128>}, {pipeline_mode = #tpu.pipeline_mode<synchronous>, transform_indices = @transform_7, window_bounds = array<i64: 32, 20>}, {pipeline_mode = #tpu.pipeline_mode<synchronous>, transform_indices = @transform_8, window_bounds = array<i64: 1, 20>}, {pipeline_mode = #tpu.pipeline_mode<synchronous>, transform_indices = @transform_9, window_bounds = array<i64: 4, 7, 20>}, {pipeline_mode = #tpu.pipeline_mode<synchronous>, transform_indices = @transform_10, window_bounds = array<i64: 7, 4, 32>}]} {
    %c0 = arith.constant 0 : index
    %c0_0 = arith.constant 0 : index
    %0 = vector.load %arg6[%c0, %c0_0] : memref<64x128xbf16, #tpu.memory_space<vmem>>, vector<64x128xbf16>
    %c0_1 = arith.constant 0 : index
    %c0_2 = arith.constant 0 : index
    %1 = vector.load %arg7[%c0_1, %c0_2] : memref<64x128xbf16, #tpu.memory_space<vmem>>, vector<64x128xbf16>
    %c0_3 = arith.constant 0 : index
    %c0_4 = arith.constant 0 : index
    %2 = vector.load %arg5[%c0_3, %c0_4] : memref<20x32xbf16, #tpu.memory_space<vmem>>, vector<20x32xbf16>
    %c0_5 = arith.constant 0 : index
    %c0_6 = arith.constant 0 : index
    %3 = vector.load %arg3[%c0_5, %c0_6] : memref<64x32xbf16, #tpu.memory_space<vmem>>, vector<64x32xbf16>
    %c0_7 = arith.constant 0 : index
    %c0_8 = arith.constant 0 : index
    %4 = vector.load %arg4[%c0_7, %c0_8] : memref<1x32xf32, #tpu.memory_space<vmem>>, vector<1x32xf32>
    %c0_9 = arith.constant 0 : index
    %c0_10 = arith.constant 0 : index
    %5 = vector.load %arg8[%c0_9, %c0_10] : memref<32x20xf32, #tpu.memory_space<vmem>>, vector<32x20xf32>
    %c0_11 = arith.constant 0 : index
    %c0_12 = arith.constant 0 : index
    %6 = vector.load %arg9[%c0_11, %c0_12] : memref<1x20xf32, #tpu.memory_space<vmem>>, vector<1x20xf32>
    %c0_13 = arith.constant 0 : index
    %c0_14 = arith.constant 0 : index
    %7 = vector.load %arg2[%c0_13, %c0_14] : memref<28x1xi32, #tpu.memory_space<vmem>>, vector<28x1xi32>
    %8 = tpu.iota {dimensions = array<i32: 1>} : vector<28x20xi32>
    %9 = vector.broadcast %7 : vector<28x1xi32> to vector<28x20xi32>
    %10 = arith.cmpi eq, %8, %9 : vector<28x20xi32>
    %cst = arith.constant 1.000000e+00 : f32
    %cst_15 = arith.constant 0.000000e+00 : f32
    %11 = vector.broadcast %cst : f32 to vector<28x20xf32>
    %12 = vector.broadcast %cst_15 : f32 to vector<28x20xf32>
    %13 = arith.select %10, %11, %12 : vector<28x20xi1>, vector<28x20xf32>
    %14 = arith.truncf %13 : vector<28x20xf32> to vector<28x20xbf16>
    %cst_16 = arith.constant dense<0.000000e+00> : vector<28x32xf32>
    %15 = tpu.matmul %14, %2, %cst_16 {dimension_numbers = #tpu.dot_dimension_numbers<[1], [0], [0], [1], [0, 0, 1, 1], [], []>} : vector<28x20xbf16>, vector<20x32xbf16>, vector<28x32xf32> -> vector<28x32xf32>
    %c0_17 = arith.constant 0 : index
    %c0_18 = arith.constant 0 : index
    %16 = vector.load %arg1[%c0_17, %c0_18] : memref<4x64xf32, #tpu.memory_space<vmem>>, vector<4x64xf32>
    %17 = arith.truncf %16 : vector<4x64xf32> to vector<4x64xbf16>
    %cst_19 = arith.constant dense<0.000000e+00> : vector<4x32xf32>
    %18 = tpu.matmul %17, %3, %cst_19 {dimension_numbers = #tpu.dot_dimension_numbers<[1], [0], [0], [1], [0, 0, 1, 1], [], []>} : vector<4x64xbf16>, vector<64x32xbf16>, vector<4x32xf32> -> vector<4x32xf32>
    %19 = vector.broadcast %4 : vector<1x32xf32> to vector<4x32xf32>
    %20 = arith.addf %18, %19 : vector<4x32xf32>
    %cst_20 = arith.constant 0.000000e+00 : f32
    %21 = vector.broadcast %cst_20 : f32 to vector<4x32xf32>
    %cst_21 = arith.constant 0.000000e+00 : f32
    %22 = vector.broadcast %cst_21 : f32 to vector<4x32xf32>
    %cst_22 = arith.constant 0.000000e+00 : f32
    %23 = vector.broadcast %cst_22 : f32 to vector<4x32xf32>
    %cst_23 = arith.constant 0.000000e+00 : f32
    %24 = vector.broadcast %cst_23 : f32 to vector<4x32xf32>
    %25 = tpu.concatenate %20, %21 in 1 : vector<4x32xf32>, vector<4x32xf32> -> vector<4x64xf32>
    %26 = arith.truncf %25 : vector<4x64xf32> to vector<4x64xbf16>
    %cst_24 = arith.constant dense<0.000000e+00> : vector<4x128xf32>
    %27 = tpu.matmul %26, %0, %cst_24 {dimension_numbers = #tpu.dot_dimension_numbers<[1], [0], [0], [1], [0, 0, 1, 1], [], []>} : vector<4x64xbf16>, vector<64x128xbf16>, vector<4x128xf32> -> vector<4x128xf32>
    %28 = arith.negf %27 : vector<4x128xf32>
    %29 = math.exp %28 : vector<4x128xf32>
    %cst_25 = arith.constant 1.000000e+00 : f32
    %30 = vector.broadcast %cst_25 : f32 to vector<4x128xf32>
    %31 = arith.addf %30, %29 : vector<4x128xf32>
    %32 = arith.divf %30, %31 : vector<4x128xf32>
    %33 = math.tanh %27 : vector<4x128xf32>
    %34 = vector.extract_strided_slice %32 {offsets = [0, 0], sizes = [4, 32], strides = [1, 1]} : vector<4x128xf32> to vector<4x32xf32>
    %35 = vector.extract_strided_slice %32 {offsets = [0, 32], sizes = [4, 32], strides = [1, 1]} : vector<4x128xf32> to vector<4x32xf32>
    %36 = vector.extract_strided_slice %33 {offsets = [0, 64], sizes = [4, 32], strides = [1, 1]} : vector<4x128xf32> to vector<4x32xf32>
    %37 = vector.extract_strided_slice %32 {offsets = [0, 96], sizes = [4, 32], strides = [1, 1]} : vector<4x128xf32> to vector<4x32xf32>
    %38 = arith.mulf %35, %23 : vector<4x32xf32>
    %39 = arith.mulf %34, %36 : vector<4x32xf32>
    %40 = arith.addf %38, %39 : vector<4x32xf32>
    %41 = math.tanh %40 : vector<4x32xf32>
    %42 = arith.mulf %37, %41 : vector<4x32xf32>
    %43 = tpu.concatenate %42, %22 in 1 : vector<4x32xf32>, vector<4x32xf32> -> vector<4x64xf32>
    %44 = arith.truncf %43 : vector<4x64xf32> to vector<4x64xbf16>
    %cst_26 = arith.constant dense<0.000000e+00> : vector<4x128xf32>
    %45 = tpu.matmul %44, %1, %cst_26 {dimension_numbers = #tpu.dot_dimension_numbers<[1], [0], [0], [1], [0, 0, 1, 1], [], []>} : vector<4x64xbf16>, vector<64x128xbf16>, vector<4x128xf32> -> vector<4x128xf32>
    %46 = arith.negf %45 : vector<4x128xf32>
    %47 = math.exp %46 : vector<4x128xf32>
    %cst_27 = arith.constant 1.000000e+00 : f32
    %48 = vector.broadcast %cst_27 : f32 to vector<4x128xf32>
    %49 = arith.addf %48, %47 : vector<4x128xf32>
    %50 = arith.divf %48, %49 : vector<4x128xf32>
    %51 = math.tanh %45 : vector<4x128xf32>
    %52 = vector.extract_strided_slice %50 {offsets = [0, 0], sizes = [4, 32], strides = [1, 1]} : vector<4x128xf32> to vector<4x32xf32>
    %53 = vector.extract_strided_slice %50 {offsets = [0, 32], sizes = [4, 32], strides = [1, 1]} : vector<4x128xf32> to vector<4x32xf32>
    %54 = vector.extract_strided_slice %51 {offsets = [0, 64], sizes = [4, 32], strides = [1, 1]} : vector<4x128xf32> to vector<4x32xf32>
    %55 = vector.extract_strided_slice %50 {offsets = [0, 96], sizes = [4, 32], strides = [1, 1]} : vector<4x128xf32> to vector<4x32xf32>
    %56 = arith.mulf %53, %24 : vector<4x32xf32>
    %57 = arith.mulf %52, %54 : vector<4x32xf32>
    %58 = arith.addf %56, %57 : vector<4x32xf32>
    %59 = math.tanh %58 : vector<4x32xf32>
    %60 = arith.mulf %55, %59 : vector<4x32xf32>
    %61 = vector.extract_strided_slice %15 {offsets = [0, 0], sizes = [4, 32], strides = [1, 1]} : vector<28x32xf32> to vector<4x32xf32>
    %62 = tpu.concatenate %61, %42 in 1 : vector<4x32xf32>, vector<4x32xf32> -> vector<4x64xf32>
    %63 = arith.truncf %62 : vector<4x64xf32> to vector<4x64xbf16>
    %cst_28 = arith.constant dense<0.000000e+00> : vector<4x128xf32>
    %64 = tpu.matmul %63, %0, %cst_28 {dimension_numbers = #tpu.dot_dimension_numbers<[1], [0], [0], [1], [0, 0, 1, 1], [], []>} : vector<4x64xbf16>, vector<64x128xbf16>, vector<4x128xf32> -> vector<4x128xf32>
    %65 = arith.negf %64 : vector<4x128xf32>
    %66 = math.exp %65 : vector<4x128xf32>
    %cst_29 = arith.constant 1.000000e+00 : f32
    %67 = vector.broadcast %cst_29 : f32 to vector<4x128xf32>
    %68 = arith.addf %67, %66 : vector<4x128xf32>
    %69 = arith.divf %67, %68 : vector<4x128xf32>
    %70 = math.tanh %64 : vector<4x128xf32>
    %71 = vector.extract_strided_slice %69 {offsets = [0, 0], sizes = [4, 32], strides = [1, 1]} : vector<4x128xf32> to vector<4x32xf32>
    %72 = vector.extract_strided_slice %69 {offsets = [0, 32], sizes = [4, 32], strides = [1, 1]} : vector<4x128xf32> to vector<4x32xf32>
    %73 = vector.extract_strided_slice %70 {offsets = [0, 64], sizes = [4, 32], strides = [1, 1]} : vector<4x128xf32> to vector<4x32xf32>
    %74 = vector.extract_strided_slice %69 {offsets = [0, 96], sizes = [4, 32], strides = [1, 1]} : vector<4x128xf32> to vector<4x32xf32>
    %75 = arith.mulf %72, %40 : vector<4x32xf32>
    %76 = arith.mulf %71, %73 : vector<4x32xf32>
    %77 = arith.addf %75, %76 : vector<4x32xf32>
    %78 = math.tanh %77 : vector<4x32xf32>
    %79 = arith.mulf %74, %78 : vector<4x32xf32>
    %80 = tpu.concatenate %79, %60 in 1 : vector<4x32xf32>, vector<4x32xf32> -> vector<4x64xf32>
    %81 = arith.truncf %80 : vector<4x64xf32> to vector<4x64xbf16>
    %cst_30 = arith.constant dense<0.000000e+00> : vector<4x128xf32>
    %82 = tpu.matmul %81, %1, %cst_30 {dimension_numbers = #tpu.dot_dimension_numbers<[1], [0], [0], [1], [0, 0, 1, 1], [], []>} : vector<4x64xbf16>, vector<64x128xbf16>, vector<4x128xf32> -> vector<4x128xf32>
    %83 = arith.negf %82 : vector<4x128xf32>
    %84 = math.exp %83 : vector<4x128xf32>
    %cst_31 = arith.constant 1.000000e+00 : f32
    %85 = vector.broadcast %cst_31 : f32 to vector<4x128xf32>
    %86 = arith.addf %85, %84 : vector<4x128xf32>
    %87 = arith.divf %85, %86 : vector<4x128xf32>
    %88 = math.tanh %82 : vector<4x128xf32>
    %89 = vector.extract_strided_slice %87 {offsets = [0, 0], sizes = [4, 32], strides = [1, 1]} : vector<4x128xf32> to vector<4x32xf32>
    %90 = vector.extract_strided_slice %87 {offsets = [0, 32], sizes = [4, 32], strides = [1, 1]} : vector<4x128xf32> to vector<4x32xf32>
    %91 = vector.extract_strided_slice %88 {offsets = [0, 64], sizes = [4, 32], strides = [1, 1]} : vector<4x128xf32> to vector<4x32xf32>
    %92 = vector.extract_strided_slice %87 {offsets = [0, 96], sizes = [4, 32], strides = [1, 1]} : vector<4x128xf32> to vector<4x32xf32>
    %93 = arith.mulf %90, %58 : vector<4x32xf32>
    %94 = arith.mulf %89, %91 : vector<4x32xf32>
    %95 = arith.addf %93, %94 : vector<4x32xf32>
    %96 = math.tanh %95 : vector<4x32xf32>
    %97 = arith.mulf %92, %96 : vector<4x32xf32>
    %98 = vector.extract_strided_slice %15 {offsets = [4, 0], sizes = [4, 32], strides = [1, 1]} : vector<28x32xf32> to vector<4x32xf32>
    %99 = tpu.concatenate %98, %79 in 1 : vector<4x32xf32>, vector<4x32xf32> -> vector<4x64xf32>
    %100 = arith.truncf %99 : vector<4x64xf32> to vector<4x64xbf16>
    %cst_32 = arith.constant dense<0.000000e+00> : vector<4x128xf32>
    %101 = tpu.matmul %100, %0, %cst_32 {dimension_numbers = #tpu.dot_dimension_numbers<[1], [0], [0], [1], [0, 0, 1, 1], [], []>} : vector<4x64xbf16>, vector<64x128xbf16>, vector<4x128xf32> -> vector<4x128xf32>
    %102 = arith.negf %101 : vector<4x128xf32>
    %103 = math.exp %102 : vector<4x128xf32>
    %cst_33 = arith.constant 1.000000e+00 : f32
    %104 = vector.broadcast %cst_33 : f32 to vector<4x128xf32>
    %105 = arith.addf %104, %103 : vector<4x128xf32>
    %106 = arith.divf %104, %105 : vector<4x128xf32>
    %107 = math.tanh %101 : vector<4x128xf32>
    %108 = vector.extract_strided_slice %106 {offsets = [0, 0], sizes = [4, 32], strides = [1, 1]} : vector<4x128xf32> to vector<4x32xf32>
    %109 = vector.extract_strided_slice %106 {offsets = [0, 32], sizes = [4, 32], strides = [1, 1]} : vector<4x128xf32> to vector<4x32xf32>
    %110 = vector.extract_strided_slice %107 {offsets = [0, 64], sizes = [4, 32], strides = [1, 1]} : vector<4x128xf32> to vector<4x32xf32>
    %111 = vector.extract_strided_slice %106 {offsets = [0, 96], sizes = [4, 32], strides = [1, 1]} : vector<4x128xf32> to vector<4x32xf32>
    %112 = arith.mulf %109, %77 : vector<4x32xf32>
    %113 = arith.mulf %108, %110 : vector<4x32xf32>
    %114 = arith.addf %112, %113 : vector<4x32xf32>
    %115 = math.tanh %114 : vector<4x32xf32>
    %116 = arith.mulf %111, %115 : vector<4x32xf32>
    %117 = tpu.concatenate %116, %97 in 1 : vector<4x32xf32>, vector<4x32xf32> -> vector<4x64xf32>
    %118 = arith.truncf %117 : vector<4x64xf32> to vector<4x64xbf16>
    %cst_34 = arith.constant dense<0.000000e+00> : vector<4x128xf32>
    %119 = tpu.matmul %118, %1, %cst_34 {dimension_numbers = #tpu.dot_dimension_numbers<[1], [0], [0], [1], [0, 0, 1, 1], [], []>} : vector<4x64xbf16>, vector<64x128xbf16>, vector<4x128xf32> -> vector<4x128xf32>
    %120 = arith.negf %119 : vector<4x128xf32>
    %121 = math.exp %120 : vector<4x128xf32>
    %cst_35 = arith.constant 1.000000e+00 : f32
    %122 = vector.broadcast %cst_35 : f32 to vector<4x128xf32>
    %123 = arith.addf %122, %121 : vector<4x128xf32>
    %124 = arith.divf %122, %123 : vector<4x128xf32>
    %125 = math.tanh %119 : vector<4x128xf32>
    %126 = vector.extract_strided_slice %124 {offsets = [0, 0], sizes = [4, 32], strides = [1, 1]} : vector<4x128xf32> to vector<4x32xf32>
    %127 = vector.extract_strided_slice %124 {offsets = [0, 32], sizes = [4, 32], strides = [1, 1]} : vector<4x128xf32> to vector<4x32xf32>
    %128 = vector.extract_strided_slice %125 {offsets = [0, 64], sizes = [4, 32], strides = [1, 1]} : vector<4x128xf32> to vector<4x32xf32>
    %129 = vector.extract_strided_slice %124 {offsets = [0, 96], sizes = [4, 32], strides = [1, 1]} : vector<4x128xf32> to vector<4x32xf32>
    %130 = arith.mulf %127, %95 : vector<4x32xf32>
    %131 = arith.mulf %126, %128 : vector<4x32xf32>
    %132 = arith.addf %130, %131 : vector<4x32xf32>
    %133 = math.tanh %132 : vector<4x32xf32>
    %134 = arith.mulf %129, %133 : vector<4x32xf32>
    %135 = vector.extract_strided_slice %15 {offsets = [8, 0], sizes = [4, 32], strides = [1, 1]} : vector<28x32xf32> to vector<4x32xf32>
    %136 = tpu.concatenate %135, %116 in 1 : vector<4x32xf32>, vector<4x32xf32> -> vector<4x64xf32>
    %137 = arith.truncf %136 : vector<4x64xf32> to vector<4x64xbf16>
    %cst_36 = arith.constant dense<0.000000e+00> : vector<4x128xf32>
    %138 = tpu.matmul %137, %0, %cst_36 {dimension_numbers = #tpu.dot_dimension_numbers<[1], [0], [0], [1], [0, 0, 1, 1], [], []>} : vector<4x64xbf16>, vector<64x128xbf16>, vector<4x128xf32> -> vector<4x128xf32>
    %139 = arith.negf %138 : vector<4x128xf32>
    %140 = math.exp %139 : vector<4x128xf32>
    %cst_37 = arith.constant 1.000000e+00 : f32
    %141 = vector.broadcast %cst_37 : f32 to vector<4x128xf32>
    %142 = arith.addf %141, %140 : vector<4x128xf32>
    %143 = arith.divf %141, %142 : vector<4x128xf32>
    %144 = math.tanh %138 : vector<4x128xf32>
    %145 = vector.extract_strided_slice %143 {offsets = [0, 0], sizes = [4, 32], strides = [1, 1]} : vector<4x128xf32> to vector<4x32xf32>
    %146 = vector.extract_strided_slice %143 {offsets = [0, 32], sizes = [4, 32], strides = [1, 1]} : vector<4x128xf32> to vector<4x32xf32>
    %147 = vector.extract_strided_slice %144 {offsets = [0, 64], sizes = [4, 32], strides = [1, 1]} : vector<4x128xf32> to vector<4x32xf32>
    %148 = vector.extract_strided_slice %143 {offsets = [0, 96], sizes = [4, 32], strides = [1, 1]} : vector<4x128xf32> to vector<4x32xf32>
    %149 = arith.mulf %146, %114 : vector<4x32xf32>
    %150 = arith.mulf %145, %147 : vector<4x32xf32>
    %151 = arith.addf %149, %150 : vector<4x32xf32>
    %152 = math.tanh %151 : vector<4x32xf32>
    %153 = arith.mulf %148, %152 : vector<4x32xf32>
    %154 = tpu.concatenate %153, %134 in 1 : vector<4x32xf32>, vector<4x32xf32> -> vector<4x64xf32>
    %155 = arith.truncf %154 : vector<4x64xf32> to vector<4x64xbf16>
    %cst_38 = arith.constant dense<0.000000e+00> : vector<4x128xf32>
    %156 = tpu.matmul %155, %1, %cst_38 {dimension_numbers = #tpu.dot_dimension_numbers<[1], [0], [0], [1], [0, 0, 1, 1], [], []>} : vector<4x64xbf16>, vector<64x128xbf16>, vector<4x128xf32> -> vector<4x128xf32>
    %157 = arith.negf %156 : vector<4x128xf32>
    %158 = math.exp %157 : vector<4x128xf32>
    %cst_39 = arith.constant 1.000000e+00 : f32
    %159 = vector.broadcast %cst_39 : f32 to vector<4x128xf32>
    %160 = arith.addf %159, %158 : vector<4x128xf32>
    %161 = arith.divf %159, %160 : vector<4x128xf32>
    %162 = math.tanh %156 : vector<4x128xf32>
    %163 = vector.extract_strided_slice %161 {offsets = [0, 0], sizes = [4, 32], strides = [1, 1]} : vector<4x128xf32> to vector<4x32xf32>
    %164 = vector.extract_strided_slice %161 {offsets = [0, 32], sizes = [4, 32], strides = [1, 1]} : vector<4x128xf32> to vector<4x32xf32>
    %165 = vector.extract_strided_slice %162 {offsets = [0, 64], sizes = [4, 32], strides = [1, 1]} : vector<4x128xf32> to vector<4x32xf32>
    %166 = vector.extract_strided_slice %161 {offsets = [0, 96], sizes = [4, 32], strides = [1, 1]} : vector<4x128xf32> to vector<4x32xf32>
    %167 = arith.mulf %164, %132 : vector<4x32xf32>
    %168 = arith.mulf %163, %165 : vector<4x32xf32>
    %169 = arith.addf %167, %168 : vector<4x32xf32>
    %170 = math.tanh %169 : vector<4x32xf32>
    %171 = arith.mulf %166, %170 : vector<4x32xf32>
    %172 = vector.extract_strided_slice %15 {offsets = [12, 0], sizes = [4, 32], strides = [1, 1]} : vector<28x32xf32> to vector<4x32xf32>
    %173 = tpu.concatenate %172, %153 in 1 : vector<4x32xf32>, vector<4x32xf32> -> vector<4x64xf32>
    %174 = arith.truncf %173 : vector<4x64xf32> to vector<4x64xbf16>
    %cst_40 = arith.constant dense<0.000000e+00> : vector<4x128xf32>
    %175 = tpu.matmul %174, %0, %cst_40 {dimension_numbers = #tpu.dot_dimension_numbers<[1], [0], [0], [1], [0, 0, 1, 1], [], []>} : vector<4x64xbf16>, vector<64x128xbf16>, vector<4x128xf32> -> vector<4x128xf32>
    %176 = arith.negf %175 : vector<4x128xf32>
    %177 = math.exp %176 : vector<4x128xf32>
    %cst_41 = arith.constant 1.000000e+00 : f32
    %178 = vector.broadcast %cst_41 : f32 to vector<4x128xf32>
    %179 = arith.addf %178, %177 : vector<4x128xf32>
    %180 = arith.divf %178, %179 : vector<4x128xf32>
    %181 = math.tanh %175 : vector<4x128xf32>
    %182 = vector.extract_strided_slice %180 {offsets = [0, 0], sizes = [4, 32], strides = [1, 1]} : vector<4x128xf32> to vector<4x32xf32>
    %183 = vector.extract_strided_slice %180 {offsets = [0, 32], sizes = [4, 32], strides = [1, 1]} : vector<4x128xf32> to vector<4x32xf32>
    %184 = vector.extract_strided_slice %181 {offsets = [0, 64], sizes = [4, 32], strides = [1, 1]} : vector<4x128xf32> to vector<4x32xf32>
    %185 = vector.extract_strided_slice %180 {offsets = [0, 96], sizes = [4, 32], strides = [1, 1]} : vector<4x128xf32> to vector<4x32xf32>
    %186 = arith.mulf %183, %151 : vector<4x32xf32>
    %187 = arith.mulf %182, %184 : vector<4x32xf32>
    %188 = arith.addf %186, %187 : vector<4x32xf32>
    %189 = math.tanh %188 : vector<4x32xf32>
    %190 = arith.mulf %185, %189 : vector<4x32xf32>
    %191 = tpu.concatenate %190, %171 in 1 : vector<4x32xf32>, vector<4x32xf32> -> vector<4x64xf32>
    %192 = arith.truncf %191 : vector<4x64xf32> to vector<4x64xbf16>
    %cst_42 = arith.constant dense<0.000000e+00> : vector<4x128xf32>
    %193 = tpu.matmul %192, %1, %cst_42 {dimension_numbers = #tpu.dot_dimension_numbers<[1], [0], [0], [1], [0, 0, 1, 1], [], []>} : vector<4x64xbf16>, vector<64x128xbf16>, vector<4x128xf32> -> vector<4x128xf32>
    %194 = arith.negf %193 : vector<4x128xf32>
    %195 = math.exp %194 : vector<4x128xf32>
    %cst_43 = arith.constant 1.000000e+00 : f32
    %196 = vector.broadcast %cst_43 : f32 to vector<4x128xf32>
    %197 = arith.addf %196, %195 : vector<4x128xf32>
    %198 = arith.divf %196, %197 : vector<4x128xf32>
    %199 = math.tanh %193 : vector<4x128xf32>
    %200 = vector.extract_strided_slice %198 {offsets = [0, 0], sizes = [4, 32], strides = [1, 1]} : vector<4x128xf32> to vector<4x32xf32>
    %201 = vector.extract_strided_slice %198 {offsets = [0, 32], sizes = [4, 32], strides = [1, 1]} : vector<4x128xf32> to vector<4x32xf32>
    %202 = vector.extract_strided_slice %199 {offsets = [0, 64], sizes = [4, 32], strides = [1, 1]} : vector<4x128xf32> to vector<4x32xf32>
    %203 = vector.extract_strided_slice %198 {offsets = [0, 96], sizes = [4, 32], strides = [1, 1]} : vector<4x128xf32> to vector<4x32xf32>
    %204 = arith.mulf %201, %169 : vector<4x32xf32>
    %205 = arith.mulf %200, %202 : vector<4x32xf32>
    %206 = arith.addf %204, %205 : vector<4x32xf32>
    %207 = math.tanh %206 : vector<4x32xf32>
    %208 = arith.mulf %203, %207 : vector<4x32xf32>
    %209 = vector.extract_strided_slice %15 {offsets = [16, 0], sizes = [4, 32], strides = [1, 1]} : vector<28x32xf32> to vector<4x32xf32>
    %210 = tpu.concatenate %209, %190 in 1 : vector<4x32xf32>, vector<4x32xf32> -> vector<4x64xf32>
    %211 = arith.truncf %210 : vector<4x64xf32> to vector<4x64xbf16>
    %cst_44 = arith.constant dense<0.000000e+00> : vector<4x128xf32>
    %212 = tpu.matmul %211, %0, %cst_44 {dimension_numbers = #tpu.dot_dimension_numbers<[1], [0], [0], [1], [0, 0, 1, 1], [], []>} : vector<4x64xbf16>, vector<64x128xbf16>, vector<4x128xf32> -> vector<4x128xf32>
    %213 = arith.negf %212 : vector<4x128xf32>
    %214 = math.exp %213 : vector<4x128xf32>
    %cst_45 = arith.constant 1.000000e+00 : f32
    %215 = vector.broadcast %cst_45 : f32 to vector<4x128xf32>
    %216 = arith.addf %215, %214 : vector<4x128xf32>
    %217 = arith.divf %215, %216 : vector<4x128xf32>
    %218 = math.tanh %212 : vector<4x128xf32>
    %219 = vector.extract_strided_slice %217 {offsets = [0, 0], sizes = [4, 32], strides = [1, 1]} : vector<4x128xf32> to vector<4x32xf32>
    %220 = vector.extract_strided_slice %217 {offsets = [0, 32], sizes = [4, 32], strides = [1, 1]} : vector<4x128xf32> to vector<4x32xf32>
    %221 = vector.extract_strided_slice %218 {offsets = [0, 64], sizes = [4, 32], strides = [1, 1]} : vector<4x128xf32> to vector<4x32xf32>
    %222 = vector.extract_strided_slice %217 {offsets = [0, 96], sizes = [4, 32], strides = [1, 1]} : vector<4x128xf32> to vector<4x32xf32>
    %223 = arith.mulf %220, %188 : vector<4x32xf32>
    %224 = arith.mulf %219, %221 : vector<4x32xf32>
    %225 = arith.addf %223, %224 : vector<4x32xf32>
    %226 = math.tanh %225 : vector<4x32xf32>
    %227 = arith.mulf %222, %226 : vector<4x32xf32>
    %228 = tpu.concatenate %227, %208 in 1 : vector<4x32xf32>, vector<4x32xf32> -> vector<4x64xf32>
    %229 = arith.truncf %228 : vector<4x64xf32> to vector<4x64xbf16>
    %cst_46 = arith.constant dense<0.000000e+00> : vector<4x128xf32>
    %230 = tpu.matmul %229, %1, %cst_46 {dimension_numbers = #tpu.dot_dimension_numbers<[1], [0], [0], [1], [0, 0, 1, 1], [], []>} : vector<4x64xbf16>, vector<64x128xbf16>, vector<4x128xf32> -> vector<4x128xf32>
    %231 = arith.negf %230 : vector<4x128xf32>
    %232 = math.exp %231 : vector<4x128xf32>
    %cst_47 = arith.constant 1.000000e+00 : f32
    %233 = vector.broadcast %cst_47 : f32 to vector<4x128xf32>
    %234 = arith.addf %233, %232 : vector<4x128xf32>
    %235 = arith.divf %233, %234 : vector<4x128xf32>
    %236 = math.tanh %230 : vector<4x128xf32>
    %237 = vector.extract_strided_slice %235 {offsets = [0, 0], sizes = [4, 32], strides = [1, 1]} : vector<4x128xf32> to vector<4x32xf32>
    %238 = vector.extract_strided_slice %235 {offsets = [0, 32], sizes = [4, 32], strides = [1, 1]} : vector<4x128xf32> to vector<4x32xf32>
    %239 = vector.extract_strided_slice %236 {offsets = [0, 64], sizes = [4, 32], strides = [1, 1]} : vector<4x128xf32> to vector<4x32xf32>
    %240 = vector.extract_strided_slice %235 {offsets = [0, 96], sizes = [4, 32], strides = [1, 1]} : vector<4x128xf32> to vector<4x32xf32>
    %241 = arith.mulf %238, %206 : vector<4x32xf32>
    %242 = arith.mulf %237, %239 : vector<4x32xf32>
    %243 = arith.addf %241, %242 : vector<4x32xf32>
    %244 = math.tanh %243 : vector<4x32xf32>
    %245 = arith.mulf %240, %244 : vector<4x32xf32>
    %246 = vector.extract_strided_slice %15 {offsets = [20, 0], sizes = [4, 32], strides = [1, 1]} : vector<28x32xf32> to vector<4x32xf32>
    %247 = tpu.concatenate %246, %227 in 1 : vector<4x32xf32>, vector<4x32xf32> -> vector<4x64xf32>
    %248 = arith.truncf %247 : vector<4x64xf32> to vector<4x64xbf16>
    %cst_48 = arith.constant dense<0.000000e+00> : vector<4x128xf32>
    %249 = tpu.matmul %248, %0, %cst_48 {dimension_numbers = #tpu.dot_dimension_numbers<[1], [0], [0], [1], [0, 0, 1, 1], [], []>} : vector<4x64xbf16>, vector<64x128xbf16>, vector<4x128xf32> -> vector<4x128xf32>
    %250 = arith.negf %249 : vector<4x128xf32>
    %251 = math.exp %250 : vector<4x128xf32>
    %cst_49 = arith.constant 1.000000e+00 : f32
    %252 = vector.broadcast %cst_49 : f32 to vector<4x128xf32>
    %253 = arith.addf %252, %251 : vector<4x128xf32>
    %254 = arith.divf %252, %253 : vector<4x128xf32>
    %255 = math.tanh %249 : vector<4x128xf32>
    %256 = vector.extract_strided_slice %254 {offsets = [0, 0], sizes = [4, 32], strides = [1, 1]} : vector<4x128xf32> to vector<4x32xf32>
    %257 = vector.extract_strided_slice %254 {offsets = [0, 32], sizes = [4, 32], strides = [1, 1]} : vector<4x128xf32> to vector<4x32xf32>
    %258 = vector.extract_strided_slice %255 {offsets = [0, 64], sizes = [4, 32], strides = [1, 1]} : vector<4x128xf32> to vector<4x32xf32>
    %259 = vector.extract_strided_slice %254 {offsets = [0, 96], sizes = [4, 32], strides = [1, 1]} : vector<4x128xf32> to vector<4x32xf32>
    %260 = arith.mulf %257, %225 : vector<4x32xf32>
    %261 = arith.mulf %256, %258 : vector<4x32xf32>
    %262 = arith.addf %260, %261 : vector<4x32xf32>
    %263 = math.tanh %262 : vector<4x32xf32>
    %264 = arith.mulf %259, %263 : vector<4x32xf32>
    %265 = tpu.concatenate %264, %245 in 1 : vector<4x32xf32>, vector<4x32xf32> -> vector<4x64xf32>
    %266 = arith.truncf %265 : vector<4x64xf32> to vector<4x64xbf16>
    %cst_50 = arith.constant dense<0.000000e+00> : vector<4x128xf32>
    %267 = tpu.matmul %266, %1, %cst_50 {dimension_numbers = #tpu.dot_dimension_numbers<[1], [0], [0], [1], [0, 0, 1, 1], [], []>} : vector<4x64xbf16>, vector<64x128xbf16>, vector<4x128xf32> -> vector<4x128xf32>
    %268 = arith.negf %267 : vector<4x128xf32>
    %269 = math.exp %268 : vector<4x128xf32>
    %cst_51 = arith.constant 1.000000e+00 : f32
    %270 = vector.broadcast %cst_51 : f32 to vector<4x128xf32>
    %271 = arith.addf %270, %269 : vector<4x128xf32>
    %272 = arith.divf %270, %271 : vector<4x128xf32>
    %273 = math.tanh %267 : vector<4x128xf32>
    %274 = vector.extract_strided_slice %272 {offsets = [0, 0], sizes = [4, 32], strides = [1, 1]} : vector<4x128xf32> to vector<4x32xf32>
    %275 = vector.extract_strided_slice %272 {offsets = [0, 32], sizes = [4, 32], strides = [1, 1]} : vector<4x128xf32> to vector<4x32xf32>
    %276 = vector.extract_strided_slice %273 {offsets = [0, 64], sizes = [4, 32], strides = [1, 1]} : vector<4x128xf32> to vector<4x32xf32>
    %277 = vector.extract_strided_slice %272 {offsets = [0, 96], sizes = [4, 32], strides = [1, 1]} : vector<4x128xf32> to vector<4x32xf32>
    %278 = arith.mulf %275, %243 : vector<4x32xf32>
    %279 = arith.mulf %274, %276 : vector<4x32xf32>
    %280 = arith.addf %278, %279 : vector<4x32xf32>
    %281 = math.tanh %280 : vector<4x32xf32>
    %282 = arith.mulf %277, %281 : vector<4x32xf32>
    %283 = vector.extract_strided_slice %15 {offsets = [24, 0], sizes = [4, 32], strides = [1, 1]} : vector<28x32xf32> to vector<4x32xf32>
    %284 = tpu.concatenate %283, %264 in 1 : vector<4x32xf32>, vector<4x32xf32> -> vector<4x64xf32>
    %285 = arith.truncf %284 : vector<4x64xf32> to vector<4x64xbf16>
    %cst_52 = arith.constant dense<0.000000e+00> : vector<4x128xf32>
    %286 = tpu.matmul %285, %0, %cst_52 {dimension_numbers = #tpu.dot_dimension_numbers<[1], [0], [0], [1], [0, 0, 1, 1], [], []>} : vector<4x64xbf16>, vector<64x128xbf16>, vector<4x128xf32> -> vector<4x128xf32>
    %287 = arith.negf %286 : vector<4x128xf32>
    %288 = math.exp %287 : vector<4x128xf32>
    %cst_53 = arith.constant 1.000000e+00 : f32
    %289 = vector.broadcast %cst_53 : f32 to vector<4x128xf32>
    %290 = arith.addf %289, %288 : vector<4x128xf32>
    %291 = arith.divf %289, %290 : vector<4x128xf32>
    %292 = math.tanh %286 : vector<4x128xf32>
    %293 = vector.extract_strided_slice %291 {offsets = [0, 0], sizes = [4, 32], strides = [1, 1]} : vector<4x128xf32> to vector<4x32xf32>
    %294 = vector.extract_strided_slice %291 {offsets = [0, 32], sizes = [4, 32], strides = [1, 1]} : vector<4x128xf32> to vector<4x32xf32>
    %295 = vector.extract_strided_slice %292 {offsets = [0, 64], sizes = [4, 32], strides = [1, 1]} : vector<4x128xf32> to vector<4x32xf32>
    %296 = vector.extract_strided_slice %291 {offsets = [0, 96], sizes = [4, 32], strides = [1, 1]} : vector<4x128xf32> to vector<4x32xf32>
    %297 = arith.mulf %294, %262 : vector<4x32xf32>
    %298 = arith.mulf %293, %295 : vector<4x32xf32>
    %299 = arith.addf %297, %298 : vector<4x32xf32>
    %300 = math.tanh %299 : vector<4x32xf32>
    %301 = arith.mulf %296, %300 : vector<4x32xf32>
    %302 = tpu.concatenate %301, %282 in 1 : vector<4x32xf32>, vector<4x32xf32> -> vector<4x64xf32>
    %303 = arith.truncf %302 : vector<4x64xf32> to vector<4x64xbf16>
    %cst_54 = arith.constant dense<0.000000e+00> : vector<4x128xf32>
    %304 = tpu.matmul %303, %1, %cst_54 {dimension_numbers = #tpu.dot_dimension_numbers<[1], [0], [0], [1], [0, 0, 1, 1], [], []>} : vector<4x64xbf16>, vector<64x128xbf16>, vector<4x128xf32> -> vector<4x128xf32>
    %305 = arith.negf %304 : vector<4x128xf32>
    %306 = math.exp %305 : vector<4x128xf32>
    %cst_55 = arith.constant 1.000000e+00 : f32
    %307 = vector.broadcast %cst_55 : f32 to vector<4x128xf32>
    %308 = arith.addf %307, %306 : vector<4x128xf32>
    %309 = arith.divf %307, %308 : vector<4x128xf32>
    %310 = math.tanh %304 : vector<4x128xf32>
    %311 = vector.extract_strided_slice %309 {offsets = [0, 0], sizes = [4, 32], strides = [1, 1]} : vector<4x128xf32> to vector<4x32xf32>
    %312 = vector.extract_strided_slice %309 {offsets = [0, 32], sizes = [4, 32], strides = [1, 1]} : vector<4x128xf32> to vector<4x32xf32>
    %313 = vector.extract_strided_slice %310 {offsets = [0, 64], sizes = [4, 32], strides = [1, 1]} : vector<4x128xf32> to vector<4x32xf32>
    %314 = vector.extract_strided_slice %309 {offsets = [0, 96], sizes = [4, 32], strides = [1, 1]} : vector<4x128xf32> to vector<4x32xf32>
    %315 = arith.mulf %312, %280 : vector<4x32xf32>
    %316 = arith.mulf %311, %313 : vector<4x32xf32>
    %317 = arith.addf %315, %316 : vector<4x32xf32>
    %318 = math.tanh %317 : vector<4x32xf32>
    %319 = arith.mulf %314, %318 : vector<4x32xf32>
    %320 = tpu.concatenate %97, %134, %171, %208, %245, %282, %319 in 0 : vector<4x32xf32>, vector<4x32xf32>, vector<4x32xf32>, vector<4x32xf32>, vector<4x32xf32>, vector<4x32xf32>, vector<4x32xf32> -> vector<28x32xf32>
    %cst_56 = arith.constant dense<0.000000e+00> : vector<28x20xf32>
    %321 = tpu.matmul %320, %5, %cst_56 {dimension_numbers = #tpu.dot_dimension_numbers<[1], [0], [0], [1], [0, 0, 1, 1], [], []>} : vector<28x32xf32>, vector<32x20xf32>, vector<28x20xf32> -> vector<28x20xf32>
    %322 = vector.broadcast %6 : vector<1x20xf32> to vector<28x20xf32>
    %323 = arith.addf %321, %322 : vector<28x20xf32>
    %cst_57 = arith.constant dense<0xFF800000> : vector<28xf32>
    %324 = vector.multi_reduction <maximumf>, %323, %cst_57 [1] : vector<28x20xf32> to vector<28xf32>
    %325 = vector.shape_cast %324 : vector<28xf32> to vector<28x1xf32>
    %326 = vector.broadcast %325 : vector<28x1xf32> to vector<28x20xf32>
    %327 = arith.subf %323, %326 : vector<28x20xf32>
    %328 = math.exp %327 : vector<28x20xf32>
    %cst_58 = arith.constant dense<0.000000e+00> : vector<28xf32>
    %329 = vector.multi_reduction <add>, %328, %cst_58 [1] : vector<28x20xf32> to vector<28xf32>
    %330 = vector.shape_cast %329 : vector<28xf32> to vector<28x1xf32>
    %331 = math.log %330 : vector<28x1xf32>
    %332 = vector.broadcast %331 : vector<28x1xf32> to vector<28x20xf32>
    %333 = arith.subf %327, %332 : vector<28x20xf32>
    %c0_59 = arith.constant 0 : index
    %c0_60 = arith.constant 0 : index
    %c0_61 = arith.constant 0 : index
    %334 = vector.load %arg11[%c0_59, %c0_60, %c0_61] : memref<7x4x32xf32, #tpu.memory_space<vmem>>, vector<1x4x32xf32>
    %335 = vector.shape_cast %334 : vector<1x4x32xf32> to vector<4x32xf32>
    %336 = vector.shape_cast %97 : vector<4x32xf32> to vector<1x4x32xf32>
    tpu.vector_store %arg11[%c0_59, %c0_60, %c0_61], %336 {strides = array<i32>} : memref<7x4x32xf32, #tpu.memory_space<vmem>>, vector<1x4x32xf32>,
    %337 = vector.extract_strided_slice %333 {offsets = [0, 0], sizes = [4, 20], strides = [1, 1]} : vector<28x20xf32> to vector<4x20xf32>
    %c0_62 = arith.constant 0 : index
    %c0_63 = arith.constant 0 : index
    %c0_64 = arith.constant 0 : index
    %338 = vector.load %arg10[%c0_62, %c0_63, %c0_64] : memref<4x7x20xf32, #tpu.memory_space<vmem>>, vector<4x1x20xf32>
    %339 = vector.shape_cast %338 : vector<4x1x20xf32> to vector<4x20xf32>
    %340 = vector.shape_cast %337 : vector<4x20xf32> to vector<4x1x20xf32>
    tpu.vector_store %arg10[%c0_62, %c0_63, %c0_64], %340 {strides = array<i32>} : memref<4x7x20xf32, #tpu.memory_space<vmem>>, vector<4x1x20xf32>,
    %c1 = arith.constant 1 : index
    %c0_65 = arith.constant 0 : index
    %c0_66 = arith.constant 0 : index
    %341 = vector.load %arg11[%c1, %c0_65, %c0_66] : memref<7x4x32xf32, #tpu.memory_space<vmem>>, vector<1x4x32xf32>
    %342 = vector.shape_cast %341 : vector<1x4x32xf32> to vector<4x32xf32>
    %343 = vector.shape_cast %134 : vector<4x32xf32> to vector<1x4x32xf32>
    tpu.vector_store %arg11[%c1, %c0_65, %c0_66], %343 {strides = array<i32>} : memref<7x4x32xf32, #tpu.memory_space<vmem>>, vector<1x4x32xf32>,
    %344 = vector.extract_strided_slice %333 {offsets = [4, 0], sizes = [4, 20], strides = [1, 1]} : vector<28x20xf32> to vector<4x20xf32>
    %c0_67 = arith.constant 0 : index
    %c1_68 = arith.constant 1 : index
    %c0_69 = arith.constant 0 : index
    %345 = vector.load %arg10[%c0_67, %c1_68, %c0_69] : memref<4x7x20xf32, #tpu.memory_space<vmem>>, vector<4x1x20xf32>
    %346 = vector.shape_cast %345 : vector<4x1x20xf32> to vector<4x20xf32>
    %347 = vector.shape_cast %344 : vector<4x20xf32> to vector<4x1x20xf32>
    tpu.vector_store %arg10[%c0_67, %c1_68, %c0_69], %347 {strides = array<i32>} : memref<4x7x20xf32, #tpu.memory_space<vmem>>, vector<4x1x20xf32>,
    %c2 = arith.constant 2 : index
    %c0_70 = arith.constant 0 : index
    %c0_71 = arith.constant 0 : index
    %348 = vector.load %arg11[%c2, %c0_70, %c0_71] : memref<7x4x32xf32, #tpu.memory_space<vmem>>, vector<1x4x32xf32>
    %349 = vector.shape_cast %348 : vector<1x4x32xf32> to vector<4x32xf32>
    %350 = vector.shape_cast %171 : vector<4x32xf32> to vector<1x4x32xf32>
    tpu.vector_store %arg11[%c2, %c0_70, %c0_71], %350 {strides = array<i32>} : memref<7x4x32xf32, #tpu.memory_space<vmem>>, vector<1x4x32xf32>,
    %351 = vector.extract_strided_slice %333 {offsets = [8, 0], sizes = [4, 20], strides = [1, 1]} : vector<28x20xf32> to vector<4x20xf32>
    %c0_72 = arith.constant 0 : index
    %c2_73 = arith.constant 2 : index
    %c0_74 = arith.constant 0 : index
    %352 = vector.load %arg10[%c0_72, %c2_73, %c0_74] : memref<4x7x20xf32, #tpu.memory_space<vmem>>, vector<4x1x20xf32>
    %353 = vector.shape_cast %352 : vector<4x1x20xf32> to vector<4x20xf32>
    %354 = vector.shape_cast %351 : vector<4x20xf32> to vector<4x1x20xf32>
    tpu.vector_store %arg10[%c0_72, %c2_73, %c0_74], %354 {strides = array<i32>} : memref<4x7x20xf32, #tpu.memory_space<vmem>>, vector<4x1x20xf32>,
    %c3 = arith.constant 3 : index
    %c0_75 = arith.constant 0 : index
    %c0_76 = arith.constant 0 : index
    %355 = vector.load %arg11[%c3, %c0_75, %c0_76] : memref<7x4x32xf32, #tpu.memory_space<vmem>>, vector<1x4x32xf32>
    %356 = vector.shape_cast %355 : vector<1x4x32xf32> to vector<4x32xf32>
    %357 = vector.shape_cast %208 : vector<4x32xf32> to vector<1x4x32xf32>
    tpu.vector_store %arg11[%c3, %c0_75, %c0_76], %357 {strides = array<i32>} : memref<7x4x32xf32, #tpu.memory_space<vmem>>, vector<1x4x32xf32>,
    %358 = vector.extract_strided_slice %333 {offsets = [12, 0], sizes = [4, 20], strides = [1, 1]} : vector<28x20xf32> to vector<4x20xf32>
    %c0_77 = arith.constant 0 : index
    %c3_78 = arith.constant 3 : index
    %c0_79 = arith.constant 0 : index
    %359 = vector.load %arg10[%c0_77, %c3_78, %c0_79] : memref<4x7x20xf32, #tpu.memory_space<vmem>>, vector<4x1x20xf32>
    %360 = vector.shape_cast %359 : vector<4x1x20xf32> to vector<4x20xf32>
    %361 = vector.shape_cast %358 : vector<4x20xf32> to vector<4x1x20xf32>
    tpu.vector_store %arg10[%c0_77, %c3_78, %c0_79], %361 {strides = array<i32>} : memref<4x7x20xf32, #tpu.memory_space<vmem>>, vector<4x1x20xf32>,
    %c4 = arith.constant 4 : index
    %c0_80 = arith.constant 0 : index
    %c0_81 = arith.constant 0 : index
    %362 = vector.load %arg11[%c4, %c0_80, %c0_81] : memref<7x4x32xf32, #tpu.memory_space<vmem>>, vector<1x4x32xf32>
    %363 = vector.shape_cast %362 : vector<1x4x32xf32> to vector<4x32xf32>
    %364 = vector.shape_cast %245 : vector<4x32xf32> to vector<1x4x32xf32>
    tpu.vector_store %arg11[%c4, %c0_80, %c0_81], %364 {strides = array<i32>} : memref<7x4x32xf32, #tpu.memory_space<vmem>>, vector<1x4x32xf32>,
    %365 = vector.extract_strided_slice %333 {offsets = [16, 0], sizes = [4, 20], strides = [1, 1]} : vector<28x20xf32> to vector<4x20xf32>
    %c0_82 = arith.constant 0 : index
    %c4_83 = arith.constant 4 : index
    %c0_84 = arith.constant 0 : index
    %366 = vector.load %arg10[%c0_82, %c4_83, %c0_84] : memref<4x7x20xf32, #tpu.memory_space<vmem>>, vector<4x1x20xf32>
    %367 = vector.shape_cast %366 : vector<4x1x20xf32> to vector<4x20xf32>
    %368 = vector.shape_cast %365 : vector<4x20xf32> to vector<4x1x20xf32>
    tpu.vector_store %arg10[%c0_82, %c4_83, %c0_84], %368 {strides = array<i32>} : memref<4x7x20xf32, #tpu.memory_space<vmem>>, vector<4x1x20xf32>,
    %c5 = arith.constant 5 : index
    %c0_85 = arith.constant 0 : index
    %c0_86 = arith.constant 0 : index
    %369 = vector.load %arg11[%c5, %c0_85, %c0_86] : memref<7x4x32xf32, #tpu.memory_space<vmem>>, vector<1x4x32xf32>
    %370 = vector.shape_cast %369 : vector<1x4x32xf32> to vector<4x32xf32>
    %371 = vector.shape_cast %282 : vector<4x32xf32> to vector<1x4x32xf32>
    tpu.vector_store %arg11[%c5, %c0_85, %c0_86], %371 {strides = array<i32>} : memref<7x4x32xf32, #tpu.memory_space<vmem>>, vector<1x4x32xf32>,
    %372 = vector.extract_strided_slice %333 {offsets = [20, 0], sizes = [4, 20], strides = [1, 1]} : vector<28x20xf32> to vector<4x20xf32>
    %c0_87 = arith.constant 0 : index
    %c5_88 = arith.constant 5 : index
    %c0_89 = arith.constant 0 : index
    %373 = vector.load %arg10[%c0_87, %c5_88, %c0_89] : memref<4x7x20xf32, #tpu.memory_space<vmem>>, vector<4x1x20xf32>
    %374 = vector.shape_cast %373 : vector<4x1x20xf32> to vector<4x20xf32>
    %375 = vector.shape_cast %372 : vector<4x20xf32> to vector<4x1x20xf32>
    tpu.vector_store %arg10[%c0_87, %c5_88, %c0_89], %375 {strides = array<i32>} : memref<4x7x20xf32, #tpu.memory_space<vmem>>, vector<4x1x20xf32>,
    %c6 = arith.constant 6 : index
    %c0_90 = arith.constant 0 : index
    %c0_91 = arith.constant 0 : index
    %376 = vector.load %arg11[%c6, %c0_90, %c0_91] : memref<7x4x32xf32, #tpu.memory_space<vmem>>, vector<1x4x32xf32>
    %377 = vector.shape_cast %376 : vector<1x4x32xf32> to vector<4x32xf32>
    %378 = vector.shape_cast %319 : vector<4x32xf32> to vector<1x4x32xf32>
    tpu.vector_store %arg11[%c6, %c0_90, %c0_91], %378 {strides = array<i32>} : memref<7x4x32xf32, #tpu.memory_space<vmem>>, vector<1x4x32xf32>,
    %379 = vector.extract_strided_slice %333 {offsets = [24, 0], sizes = [4, 20], strides = [1, 1]} : vector<28x20xf32> to vector<4x20xf32>
    %c0_92 = arith.constant 0 : index
    %c6_93 = arith.constant 6 : index
    %c0_94 = arith.constant 0 : index
    %380 = vector.load %arg10[%c0_92, %c6_93, %c0_94] : memref<4x7x20xf32, #tpu.memory_space<vmem>>, vector<4x1x20xf32>
    %381 = vector.shape_cast %380 : vector<4x1x20xf32> to vector<4x20xf32>
    %382 = vector.shape_cast %379 : vector<4x20xf32> to vector<4x1x20xf32>
    tpu.vector_store %arg10[%c0_92, %c6_93, %c0_94], %382 {strides = array<i32>} : memref<4x7x20xf32, #tpu.memory_space<vmem>>, vector<4x1x20xf32>,
    return
  }
  func.func @transform_0(%arg0: i32) -> (i32, i32) {
    %c0_i32 = arith.constant 0 : i32
    %c0_i32_0 = arith.constant 0 : i32
    %c0_i32_1 = arith.constant 0 : i32
    return %c0_i32, %c0_i32_0 : i32, i32
  }
  func.func @transform_1(%arg0: i32) -> (i32, i32) {
    %c0_i32 = arith.constant 0 : i32
    %c0_i32_0 = arith.constant 0 : i32
    %c0_i32_1 = arith.constant 0 : i32
    return %c0_i32, %c0_i32_0 : i32, i32
  }
  func.func @transform_2(%arg0: i32) -> (i32, i32) {
    %c0_i32 = arith.constant 0 : i32
    %c0_i32_0 = arith.constant 0 : i32
    %c0_i32_1 = arith.constant 0 : i32
    return %c0_i32, %c0_i32_0 : i32, i32
  }
  func.func @transform_3(%arg0: i32) -> (i32, i32) {
    %c0_i32 = arith.constant 0 : i32
    %c0_i32_0 = arith.constant 0 : i32
    %c0_i32_1 = arith.constant 0 : i32
    return %c0_i32, %c0_i32_0 : i32, i32
  }
  func.func @transform_4(%arg0: i32) -> (i32, i32) {
    %c0_i32 = arith.constant 0 : i32
    %c0_i32_0 = arith.constant 0 : i32
    %c0_i32_1 = arith.constant 0 : i32
    return %c0_i32, %c0_i32_0 : i32, i32
  }
  func.func @transform_5(%arg0: i32) -> (i32, i32) {
    %c0_i32 = arith.constant 0 : i32
    %c0_i32_0 = arith.constant 0 : i32
    %c0_i32_1 = arith.constant 0 : i32
    return %c0_i32, %c0_i32_0 : i32, i32
  }
  func.func @transform_6(%arg0: i32) -> (i32, i32) {
    %c0_i32 = arith.constant 0 : i32
    %c0_i32_0 = arith.constant 0 : i32
    %c0_i32_1 = arith.constant 0 : i32
    return %c0_i32, %c0_i32_0 : i32, i32
  }
  func.func @transform_7(%arg0: i32) -> (i32, i32) {
    %c0_i32 = arith.constant 0 : i32
    %c0_i32_0 = arith.constant 0 : i32
    %c0_i32_1 = arith.constant 0 : i32
    return %c0_i32, %c0_i32_0 : i32, i32
  }
  func.func @transform_8(%arg0: i32) -> (i32, i32) {
    %c0_i32 = arith.constant 0 : i32
    %c0_i32_0 = arith.constant 0 : i32
    %c0_i32_1 = arith.constant 0 : i32
    return %c0_i32, %c0_i32_0 : i32, i32
  }
  func.func @transform_9(%arg0: i32) -> (i32, i32, i32) {
    %c0_i32 = arith.constant 0 : i32
    %c0_i32_0 = arith.constant 0 : i32
    %c0_i32_1 = arith.constant 0 : i32
    %c0_i32_2 = arith.constant 0 : i32
    return %c0_i32, %c0_i32_0, %c0_i32_1 : i32, i32, i32
  }
  func.func @transform_10(%arg0: i32) -> (i32, i32, i32) {
    %c0_i32 = arith.constant 0 : i32
    %c0_i32_0 = arith.constant 0 : i32
    %c0_i32_1 = arith.constant 0 : i32
    %c0_i32_2 = arith.constant 0 : i32
    return %c0_i32, %c0_i32_0, %c0_i32_1 : i32, i32, i32
  }
}

</mosaic_0001>

<llo_original>
// kernel: show_tell_forward.1
$region0: #{show_tell_forward.1}
  #allocation0 [shape = 'u32[]', space=smem, size = 0x4, offset = 0x4, fixed_abs, tag = 'smem constant byte address 0x4 - core index']
  #allocation1 [shape = 'u32[144,128]{1,0:T(1,128)}', space=vmem, size = 0x12000, scoped, tag = 'internal scratch']
  %s0 = inlined_call_operand.vmem [shape: f32[4,64], index: 0, kind: input, shape index: {}]
  %s1 = inlined_call_operand.vmem [shape: s32[28,1], index: 1, kind: input, shape index: {}]
  %s2 = inlined_call_operand.vmem [shape: bf16[64,32], index: 2, kind: input, shape index: {}]
  %s3 = inlined_call_operand.vmem [shape: f32[1,32], index: 3, kind: input, shape index: {}]
  %s4 = inlined_call_operand.vmem [shape: bf16[20,32], index: 4, kind: input, shape index: {}]
  %s5 = inlined_call_operand.vmem [shape: bf16[64,128], index: 5, kind: input, shape index: {}]
  %s6 = inlined_call_operand.vmem [shape: bf16[64,128], index: 6, kind: input, shape index: {}]
  %s7 = inlined_call_operand.vmem [shape: f32[32,20], index: 7, kind: input, shape index: {}]
  %s8 = inlined_call_operand.vmem [shape: f32[1,20], index: 8, kind: input, shape index: {}]
  %s9 = inlined_call_operand.vmem [shape: f32[4,7,20], index: 9, kind: output, shape index: {0}]
  %s10 = inlined_call_operand.hbm [shape: f32[7,4,32], index: 10, kind: output, shape index: {1}]
  %11 = xla_tuple %s9, %s10
  %s12 = sld [smem:[#allocation0]]
  $region54: #{show_tell_forward.1} parent=0
    _
  %s14 = ssub.s32 1, %s12
  %s15 = scalar_select 0, %s14, %s12
  $region1: #{show_tell_forward.1} parent=0
    #allocation2 [shape = 'u8[14336]{0}', space=vmem, size = 0x3800, scoped, tag = 'output window, operand 1, single buffered']
    #allocation3 [shape = 's32[1]{0}', space=sflag, size = 0x4, scoped, tag = 'scoped memory for show_tell_forward.1']
    %16 = vsyncpa [#allocation3], 0
    // Predicated region
    $region2: #{show_tell_forward.1} parent=1 // pred_check
      _
    $region3: #{show_tell_forward.1} parent=1 // pred_check_branch
      %18 = sbr.rel (0) target = $region5
    $region4: #{show_tell_forward.1} parent=1 // pred_region
      _
    $region5: #{show_tell_forward.1} parent=1 // pred_fallthru
      _
    // Predicated region
    $region6: #{show_tell_forward.1} parent=1 // pred_check
      _
    $region7: #{show_tell_forward.1} parent=1 // pred_check_branch
      %20 = sbr.rel (0) target = $region9
    $region8: #{show_tell_forward.1} parent=1 // pred_region
      _
    $region9: #{show_tell_forward.1} parent=1 // pred_fallthru
      _
    // Predicated region
    $region10: #{show_tell_forward.1} parent=1 // pred_check
      _
    $region11: #{show_tell_forward.1} parent=1 // pred_check_branch
      %22 = sbr.rel (0) target = $region13
    $region12: #{show_tell_forward.1} parent=1 // pred_region
      _
    $region13: #{show_tell_forward.1} parent=1 // pred_fallthru
      _
    // Predicated region
    $region14: #{show_tell_forward.1} parent=1 // pred_check
      _
    $region15: #{show_tell_forward.1} parent=1 // pred_check_branch
      %24 = sbr.rel (0) target = $region17
    $region16: #{show_tell_forward.1} parent=1 // pred_region
      _
    $region17: #{show_tell_forward.1} parent=1 // pred_fallthru
      _
    // Predicated region
    $region18: #{show_tell_forward.1} parent=1 // pred_check
      _
    $region19: #{show_tell_forward.1} parent=1 // pred_check_branch
      %26 = sbr.rel (0) target = $region21
    $region20: #{show_tell_forward.1} parent=1 // pred_region
      _
    $region21: #{show_tell_forward.1} parent=1 // pred_fallthru
      _
    // Predicated region
    $region22: #{show_tell_forward.1} parent=1 // pred_check
      _
    $region23: #{show_tell_forward.1} parent=1 // pred_check_branch
      %28 = sbr.rel (0) target = $region25
    $region24: #{show_tell_forward.1} parent=1 // pred_region
      _
    $region25: #{show_tell_forward.1} parent=1 // pred_fallthru
      _
    // Predicated region
    $region26: #{show_tell_forward.1} parent=1 // pred_check
      _
    $region27: #{show_tell_forward.1} parent=1 // pred_check_branch
      %30 = sbr.rel (0) target = $region29
    $region28: #{show_tell_forward.1} parent=1 // pred_region
      _
    $region29: #{show_tell_forward.1} parent=1 // pred_fallthru
      _
    // Predicated region
    $region30: #{show_tell_forward.1} parent=1 // pred_check
      _
    $region31: #{show_tell_forward.1} parent=1 // pred_check_branch
      %32 = sbr.rel (0) target = $region33
    $region32: #{show_tell_forward.1} parent=1 // pred_region
      _
    $region33: #{show_tell_forward.1} parent=1 // pred_fallthru
      _
    // Predicated region
    $region34: #{show_tell_forward.1} parent=1 // pred_check
      _
    $region35: #{show_tell_forward.1} parent=1 // pred_check_branch
      %34 = sbr.rel (0) target = $region37
    $region36: #{show_tell_forward.1} parent=1 // pred_region
      _
    $region37: #{show_tell_forward.1} parent=1 // pred_fallthru
      _
    %v36 = vld [vmem:[%s5] sm:$0xf]
    %v37 = vld [vmem:[%s5 + $0x4] sm:$0xf]
    %v38 = vld [vmem:[%s5 + $0x8] sm:$0xf]
    %v39 = vld [vmem:[%s5 + $0xc] sm:$0xf]
    %v40 = vld [vmem:[%s5 + $0x10] sm:$0xf]
    %v41 = vld [vmem:[%s5 + $0x14] sm:$0xf]
    %v42 = vld [vmem:[%s5 + $0x18] sm:$0xf]
    %v43 = vld [vmem:[%s5 + $0x1c] sm:$0xf]
    %v44 = vld [vmem:[%s6] sm:$0xf]
    %v45 = vld [vmem:[%s6 + $0x4] sm:$0xf]
    %v46 = vld [vmem:[%s6 + $0x8] sm:$0xf]
    %v47 = vld [vmem:[%s6 + $0xc] sm:$0xf]
    %v48 = vld [vmem:[%s6 + $0x10] sm:$0xf]
    %v49 = vld [vmem:[%s6 + $0x14] sm:$0xf]
    %v50 = vld [vmem:[%s6 + $0x18] sm:$0xf]
    %v51 = vld [vmem:[%s6 + $0x1c] sm:$0xf]
    %v52 = vld [vmem:[%s4] sm:$0xf]
    %v53 = vld [vmem:[%s4 + $0x4] sm:$0xf]
    %v54 = vld [vmem:[%s4 + $0x8] sm:$0x3]
    %v55 = vld [vmem:[%s2] sm:$0xf]
    %v56 = vld [vmem:[%s2 + $0x4] sm:$0xf]
    %v57 = vld [vmem:[%s2 + $0x8] sm:$0xf]
    %v58 = vld [vmem:[%s2 + $0xc] sm:$0xf]
    %v59 = vld [vmem:[%s2 + $0x10] sm:$0xf]
    %v60 = vld [vmem:[%s2 + $0x14] sm:$0xf]
    %v61 = vld [vmem:[%s2 + $0x18] sm:$0xf]
    %v62 = vld [vmem:[%s2 + $0x1c] sm:$0xf]
    %v63 = vld [vmem:[%s3] sm:$0x1]
    %v64 = vld [vmem:[%s7] sm:$0xff]
    %v65 = vld [vmem:[%s7 + $0x8] sm:$0xff]
    %v66 = vld [vmem:[%s7 + $0x10] sm:$0xff]
    %v67 = vld [vmem:[%s7 + $0x18] sm:$0xff]
    %v68 = vld [vmem:[%s8] sm:$0x1]
    %v69 = vld [vmem:[%s1] sm:$0xff]
    %v70 = vld [vmem:[%s1 + $0x8] sm:$0xff]
    %v71 = vld [vmem:[%s1 + $0x10] sm:$0xff]
    %v72 = vld [vmem:[%s1 + $0x18] sm:$0xf]
    %v73 = vlaneseq
    %v74 = vand.u32 %v73, 127
    %75 = vset.pattern.permute.xlu0 0
    %76 = vperm.xlu0 %75, %v69
    %v77 = vpop.permute.xlu0 %76
    %78 = vset.pattern.permute.xlu0 0
    %79 = vperm.xlu0 %78, %v70
    %v80 = vpop.permute.xlu0 %79
    %81 = vset.pattern.permute.xlu0 0
    %82 = vperm.xlu0 %81, %v71
    %v83 = vpop.permute.xlu0 %82
    %84 = vset.pattern.permute.xlu0 0
    %85 = vperm.xlu0 %84, %v72
    %v86 = vpop.permute.xlu0 %85
    %vm87 = vcmp.eq.s32.totalorder %v74, %v77
    %vm88 = vcmp.eq.s32.totalorder %v74, %v80
    %vm89 = vcmp.eq.s32.totalorder %v74, %v83
    %vm90 = vcmp.eq.s32.totalorder %v74, %v86
    %v91 = vsel %vm87, 1.0, 0.0
    %v92 = vsel %vm88, 1.0, 0.0
    %v93 = vsel %vm89, 1.0, 0.0
    %v94 = vsel %vm90, 1.0, 0.0
    %v95 = vpack.c.bf16 %v92, %v91
    %v96 = vpack.c.bf16 %v94, %v93
    %v100 = vunpack.c.l.b16 %v52
    %v101 = vunpack.c.l.b16 %v53
    %v102 = vunpack.c.l.b16 %v54
    %v103 = vpack.c.b16 %v101, %v100
    %v104 = vpack.c.b16 %v102, %v102
    %vm106 = vcmask 162816
    %v108 = vsel %vm106, %v95, 0
    %v111 = vsel %vm106, %v96, 0
    %vm113 = vcmask 1041408
    %v115 = vsel %vm113, %v104, 0
    %117 = vmatprep.subr.bf16.mxu0 0
    %118 = vmatpush1.bf16.msra.mxu0 %v103
    %119 = vmatprep.subr.bf16.mxu0 0
    %120 = vmatpush1.bf16.msra.mxu0 %v115
    %121 = vmatprep.subr.bf16.mxu0 0
    %122 = vmatpush1.bf16.msra.mxu0 0
    %123 = vmatprep.subr.bf16.mxu0 0
    %124 = vmatpush1.bf16.msra.mxu0 0
    %125 = vmatprep.subr.bf16.mxu0 0
    %126 = vmatpush1.bf16.msra.mxu0 0
    %127 = vmatprep.subr.bf16.mxu0 0
    %128 = vmatpush1.bf16.msra.mxu0 0
    %129 = vmatprep.subr.bf16.mxu0 0
    %130 = vmatpush1.bf16.msra.mxu0 0
    %131 = vmatprep.subr.bf16.mxu0 0
    %132 = vmatpush1.bf16.msra.mxu0 0
    %133 = vmatprep.subr.bf16.mxu0 0
    %134 = vmatpush1.bf16.msra.mxu0 0
    %135 = vmatprep.subr.bf16.mxu0 0
    %136 = vmatpush1.bf16.msra.mxu0 0
    %137 = vmatprep.subr.bf16.mxu0 0
    %138 = vmatpush1.bf16.msra.mxu0 0
    %139 = vmatprep.subr.bf16.mxu0 0
    %140 = vmatpush1.bf16.msra.mxu0 0
    %141 = vmatprep.subr.bf16.mxu0 0
    %142 = vmatpush1.bf16.msra.mxu0 0
    %143 = vmatprep.subr.bf16.mxu0 0
    %144 = vmatpush1.bf16.msra.mxu0 0
    %145 = vmatprep.subr.bf16.mxu0 0
    %146 = vmatpush1.bf16.msra.mxu0 0
    %147 = vmatprep.subr.bf16.mxu0 0
    %148 = vmatpush1.bf16.msra.mxu0 0
    %149 = vmatprep.mubr.bf16.mxu0 0
    %150 = vmatmul.mubr.bf16.gmra.mrb[0].mxu0 %v108
    %v151 = vpop.f32.mrb[0].mxu0
    %v152 = vadd.f32 0.0, %v151
    %v153 = vpop.f32.mrb[0].mxu0
    %v154 = vpop.f32.mrb[0].mxu0
    %v155 = vadd.f32 0.0, %v154
    %v156 = vpop.f32.mrb[0].mxu0
    %157 = vmatprep.mubr.bf16.mxu0 0
    %158 = vmatmul.mubr.bf16.gmra.mrb[0].mxu0 %v111
    %v159 = vpop.f32.mrb[0].mxu0
    %v160 = vadd.f32 0.0, %v159
    %v161 = vpop.f32.mrb[0].mxu0
    %v162 = vpop.f32.mrb[0].mxu0
    %v163 = vadd.f32 0.0, %v162
    %v164 = vpop.f32.mrb[0].mxu0
    %165 = vdwg.mxu0
    %v166 = vld [vmem:[%s0] sm:$0xf]
    %v167 = vpack.c.bf16 %v166, %v166
    %v169 = vlaneseq
    %v170 = vshrl.u32 %v169, 7
    %v171 = vsub.s32 0, %v170
    %v172 = vrot.slane %v63, %v171
    %v182 = vunpack.c.l.b16 %v55
    %v183 = vunpack.c.l.b16 %v56
    %v184 = vunpack.c.l.b16 %v57
    %v185 = vunpack.c.l.b16 %v58
    %v186 = vunpack.c.l.b16 %v59
    %v187 = vunpack.c.l.b16 %v60
    %v188 = vunpack.c.l.b16 %v61
    %v189 = vunpack.c.l.b16 %v62
    %v190 = vpack.c.b16 %v183, %v182
    %v191 = vpack.c.b16 %v185, %v184
    %v192 = vpack.c.b16 %v187, %v186
    %v193 = vpack.c.b16 %v189, %v188
    %vm198 = vcmask 523264
    %v200 = vsel %vm198, %v167, 0
    %202 = vmatprep.subr.bf16.mxu0 0
    %203 = vmatpush1.bf16.msra.mxu0 %v190
    %204 = vmatprep.subr.bf16.mxu0 0
    %205 = vmatpush1.bf16.msra.mxu0 %v191
    %206 = vmatprep.subr.bf16.mxu0 0
    %207 = vmatpush1.bf16.msra.mxu0 %v192
    %208 = vmatprep.subr.bf16.mxu0 0
    %209 = vmatpush1.bf16.msra.mxu0 %v193
    %210 = vmatprep.subr.bf16.mxu0 0
    %211 = vmatpush1.bf16.msra.mxu0 0
    %212 = vmatprep.subr.bf16.mxu0 0
    %213 = vmatpush1.bf16.msra.mxu0 0
    %214 = vmatprep.subr.bf16.mxu0 0
    %215 = vmatpush1.bf16.msra.mxu0 0
    %216 = vmatprep.subr.bf16.mxu0 0
    %217 = vmatpush1.bf16.msra.mxu0 0
    %218 = vmatprep.subr.bf16.mxu0 0
    %219 = vmatpush1.bf16.msra.mxu0 0
    %220 = vmatprep.subr.bf16.mxu0 0
    %221 = vmatpush1.bf16.msra.mxu0 0
    %222 = vmatprep.subr.bf16.mxu0 0
    %223 = vmatpush1.bf16.msra.mxu0 0
    %224 = vmatprep.subr.bf16.mxu0 0
    %225 = vmatpush1.bf16.msra.mxu0 0
    %226 = vmatprep.subr.bf16.mxu0 0
    %227 = vmatpush1.bf16.msra.mxu0 0
    %228 = vmatprep.subr.bf16.mxu0 0
    %229 = vmatpush1.bf16.msra.mxu0 0
    %230 = vmatprep.subr.bf16.mxu0 0
    %231 = vmatpush1.bf16.msra.mxu0 0
    %232 = vmatprep.subr.bf16.mxu0 0
    %233 = vmatpush1.bf16.msra.mxu0 0
    %234 = vmatprep.mubr.bf16.mxu0 0
    %235 = vmatmul.mubr.bf16.gmra.mrb[0].mxu0 %v200
    %v236 = vpop.f32.mrb[0].mxu0
    %v237 = vadd.f32 %v172, %v236
    %v238 = vpop.f32.mrb[0].mxu0
    %v239 = vpop.f32.mrb[0].mxu0
    %v240 = vpop.f32.mrb[0].mxu0
    %241 = vdwg.mxu0
    %vm242 = vcmask 261120
    %v243 = vsel %vm242, %v237, 0.0
    %v244 = vpack.c.bf16 %v243, %v243
    %v253 = vunpack.c.l.b16 %v36
    %v254 = vunpack.c.l.b16 %v37
    %v255 = vunpack.c.l.b16 %v38
    %v256 = vunpack.c.l.b16 %v39
    %v257 = vunpack.c.l.b16 %v40
    %v258 = vunpack.c.l.b16 %v41
    %v259 = vunpack.c.l.b16 %v42
    %v260 = vunpack.c.l.b16 %v43
    %v261 = vpack.c.b16 %v254, %v253
    %v262 = vpack.c.b16 %v256, %v255
    %v263 = vpack.c.b16 %v258, %v257
    %v264 = vpack.c.b16 %v260, %v259
    %v270 = vsel %vm198, %v244, 0
    %272 = vmatprep.subr.bf16.mxu0 0
    %273 = vmatpush1.bf16.msra.mxu0 %v261
    %274 = vmatprep.subr.bf16.mxu0 0
    %275 = vmatpush1.bf16.msra.mxu0 %v262
    %276 = vmatprep.subr.bf16.mxu0 0
    %277 = vmatpush1.bf16.msra.mxu0 %v263
    %278 = vmatprep.subr.bf16.mxu0 0
    %279 = vmatpush1.bf16.msra.mxu0 %v264
    %280 = vmatprep.subr.bf16.mxu0 0
    %281 = vmatpush1.bf16.msra.mxu0 0
    %282 = vmatprep.subr.bf16.mxu0 0
    %283 = vmatpush1.bf16.msra.mxu0 0
    %284 = vmatprep.subr.bf16.mxu0 0
    %285 = vmatpush1.bf16.msra.mxu0 0
    %286 = vmatprep.subr.bf16.mxu0 0
    %287 = vmatpush1.bf16.msra.mxu0 0
    %288 = vmatprep.subr.bf16.mxu0 0
    %289 = vmatpush1.bf16.msra.mxu0 0
    %290 = vmatprep.subr.bf16.mxu0 0
    %291 = vmatpush1.bf16.msra.mxu0 0
    %292 = vmatprep.subr.bf16.mxu0 0
    %293 = vmatpush1.bf16.msra.mxu0 0
    %294 = vmatprep.subr.bf16.mxu0 0
    %295 = vmatpush1.bf16.msra.mxu0 0
    %296 = vmatprep.subr.bf16.mxu0 0
    %297 = vmatpush1.bf16.msra.mxu0 0
    %298 = vmatprep.subr.bf16.mxu0 0
    %299 = vmatpush1.bf16.msra.mxu0 0
    %300 = vmatprep.subr.bf16.mxu0 0
    %301 = vmatpush1.bf16.msra.mxu0 0
    %302 = vmatprep.subr.bf16.mxu0 0
    %303 = vmatpush1.bf16.msra.mxu0 0
    %304 = vmatprep.mubr.bf16.mxu0 0
    %305 = vmatmul.mubr.bf16.gmra.mrb[0].mxu0 %v270
    %v306 = vpop.f32.mrb[0].mxu0
    %v307 = vadd.f32 0.0, %v306
    %v308 = vpop.f32.mrb[0].mxu0
    %v309 = vpop.f32.mrb[0].mxu0
    %v310 = vpop.f32.mrb[0].mxu0
    %311 = vdwg.mxu0
    %v312 = vxor.u32 %v307, 2147483648
    %v313 = vmul.f32 %v312, 1.442695
    %v314 = vpow.pop %v313
    %v315 = vadd.f32 %v314, 1.0
    %v316 = vrcp.pop %v315
    %v317 = vmul.f32 1.0, %v316
    %v318 = vtanh.pop %v307
    %v319 = vmul.f32 %v317, 0.0
    %321 = vrot.lane.b32.xlu0 %v318, 64
    %v322 = vpop.permute.xlu0 %321
    %v324 = vmul.f32 %v317, %v322
    %326 = vrot.lane.b32.xlu0 %v324, 32
    %v327 = vpop.permute.xlu0 %326
    %v329 = vadd.f32 %v319, %v327
    %v330 = vtanh.pop %v329
    %332 = vrot.lane.b32.xlu0 %v330, 64
    %v333 = vpop.permute.xlu0 %332
    %v335 = vmul.f32 %v317, %v333
    %337 = vrot.lane.b32.xlu0 %v335, 32
    %v338 = vpop.permute.xlu0 %337
    %v340 = vsel %vm242, %v338, 0.0
    %v341 = vpack.c.bf16 %v340, %v340
    %v350 = vunpack.c.l.b16 %v44
    %v351 = vunpack.c.l.b16 %v45
    %v352 = vunpack.c.l.b16 %v46
    %v353 = vunpack.c.l.b16 %v47
    %v354 = vunpack.c.l.b16 %v48
    %v355 = vunpack.c.l.b16 %v49
    %v356 = vunpack.c.l.b16 %v50
    %v357 = vunpack.c.l.b16 %v51
    %v358 = vpack.c.b16 %v351, %v350
    %v359 = vpack.c.b16 %v353, %v352
    %v360 = vpack.c.b16 %v355, %v354
    %v361 = vpack.c.b16 %v357, %v356
    %v367 = vsel %vm198, %v341, 0
    %369 = vmatprep.subr.bf16.mxu0 0
    %370 = vmatpush1.bf16.msra.mxu0 %v358
    %371 = vmatprep.subr.bf16.mxu0 0
    %372 = vmatpush1.bf16.msra.mxu0 %v359
    %373 = vmatprep.subr.bf16.mxu0 0
    %374 = vmatpush1.bf16.msra.mxu0 %v360
    %375 = vmatprep.subr.bf16.mxu0 0
    %376 = vmatpush1.bf16.msra.mxu0 %v361
    %377 = vmatprep.subr.bf16.mxu0 0
    %378 = vmatpush1.bf16.msra.mxu0 0
    %379 = vmatprep.subr.bf16.mxu0 0
    %380 = vmatpush1.bf16.msra.mxu0 0
    %381 = vmatprep.subr.bf16.mxu0 0
    %382 = vmatpush1.bf16.msra.mxu0 0
    %383 = vmatprep.subr.bf16.mxu0 0
    %384 = vmatpush1.bf16.msra.mxu0 0
    %385 = vmatprep.subr.bf16.mxu0 0
    %386 = vmatpush1.bf16.msra.mxu0 0
    %387 = vmatprep.subr.bf16.mxu0 0
    %388 = vmatpush1.bf16.msra.mxu0 0
    %389 = vmatprep.subr.bf16.mxu0 0
    %390 = vmatpush1.bf16.msra.mxu0 0
    %391 = vmatprep.subr.bf16.mxu0 0
    %392 = vmatpush1.bf16.msra.mxu0 0
    %393 = vmatprep.subr.bf16.mxu0 0
    %394 = vmatpush1.bf16.msra.mxu0 0
    %395 = vmatprep.subr.bf16.mxu0 0
    %396 = vmatpush1.bf16.msra.mxu0 0
    %397 = vmatprep.subr.bf16.mxu0 0
    %398 = vmatpush1.bf16.msra.mxu0 0
    %399 = vmatprep.subr.bf16.mxu0 0
    %400 = vmatpush1.bf16.msra.mxu0 0
    %401 = vmatprep.mubr.bf16.mxu0 0
    %402 = vmatmul.mubr.bf16.gmra.mrb[0].mxu0 %v367
    %v403 = vpop.f32.mrb[0].mxu0
    %v404 = vadd.f32 0.0, %v403
    %v405 = vpop.f32.mrb[0].mxu0
    %v406 = vpop.f32.mrb[0].mxu0
    %v407 = vpop.f32.mrb[0].mxu0
    %408 = vdwg.mxu0
    %v409 = vxor.u32 %v404, 2147483648
    %v410 = vmul.f32 %v409, 1.442695
    %v411 = vpow.pop %v410
    %v412 = vadd.f32 %v411, 1.0
    %v413 = vrcp.pop %v412
    %v414 = vmul.f32 1.0, %v413
    %v415 = vtanh.pop %v404
    %v416 = vmul.f32 %v414, 0.0
    %418 = vrot.lane.b32.xlu0 %v415, 64
    %v419 = vpop.permute.xlu0 %418
    %v421 = vmul.f32 %v414, %v419
    %423 = vrot.lane.b32.xlu0 %v421, 32
    %v424 = vpop.permute.xlu0 %423
    %v426 = vadd.f32 %v416, %v424
    %v427 = vtanh.pop %v426
    %429 = vrot.lane.b32.xlu0 %v427, 64
    %v430 = vpop.permute.xlu0 %429
    %v432 = vmul.f32 %v414, %v430
    %433 = vrot.lane.b32.xlu0 %v335, 64
    %v434 = vpop.permute.xlu0 %433
    %v436 = vsel %vm242, %v152, %v434
    %v437 = vpack.c.bf16 %v436, %v436
    %v439 = vsel %vm198, %v437, 0
    %441 = vmatprep.subr.bf16.mxu0 0
    %442 = vmatpush1.bf16.msra.mxu0 %v261
    %443 = vmatprep.subr.bf16.mxu0 0
    %444 = vmatpush1.bf16.msra.mxu0 %v262
    %445 = vmatprep.subr.bf16.mxu0 0
    %446 = vmatpush1.bf16.msra.mxu0 %v263
    %447 = vmatprep.subr.bf16.mxu0 0
    %448 = vmatpush1.bf16.msra.mxu0 %v264
    %449 = vmatprep.subr.bf16.mxu0 0
    %450 = vmatpush1.bf16.msra.mxu0 0
    %451 = vmatprep.subr.bf16.mxu0 0
    %452 = vmatpush1.bf16.msra.mxu0 0
    %453 = vmatprep.subr.bf16.mxu0 0
    %454 = vmatpush1.bf16.msra.mxu0 0
    %455 = vmatprep.subr.bf16.mxu0 0
    %456 = vmatpush1.bf16.msra.mxu0 0
    %457 = vmatprep.subr.bf16.mxu0 0
    %458 = vmatpush1.bf16.msra.mxu0 0
    %459 = vmatprep.subr.bf16.mxu0 0
    %460 = vmatpush1.bf16.msra.mxu0 0
    %461 = vmatprep.subr.bf16.mxu0 0
    %462 = vmatpush1.bf16.msra.mxu0 0
    %463 = vmatprep.subr.bf16.mxu0 0
    %464 = vmatpush1.bf16.msra.mxu0 0
    %465 = vmatprep.subr.bf16.mxu0 0
    %466 = vmatpush1.bf16.msra.mxu0 0
    %467 = vmatprep.subr.bf16.mxu0 0
    %468 = vmatpush1.bf16.msra.mxu0 0
    %469 = vmatprep.subr.bf16.mxu0 0
    %470 = vmatpush1.bf16.msra.mxu0 0
    %471 = vmatprep.subr.bf16.mxu0 0
    %472 = vmatpush1.bf16.msra.mxu0 0
    %473 = vmatprep.mubr.bf16.mxu0 0
    %474 = vmatmul.mubr.bf16.gmra.mrb[0].mxu0 %v439
    %v475 = vpop.f32.mrb[0].mxu0
    %v476 = vadd.f32 0.0, %v475
    %v477 = vpop.f32.mrb[0].mxu0
    %v478 = vpop.f32.mrb[0].mxu0
    %v479 = vpop.f32.mrb[0].mxu0
    %480 = vdwg.mxu0
    %v481 = vxor.u32 %v476, 2147483648
    %v482 = vmul.f32 %v481, 1.442695
    %v483 = vpow.pop %v482
    %v484 = vadd.f32 %v483, 1.0
    %v485 = vrcp.pop %v484
    %v486 = vmul.f32 1.0, %v485
    %v487 = vtanh.pop %v476
    %v488 = vmul.f32 %v486, %v329
    %490 = vrot.lane.b32.xlu0 %v487, 64
    %v491 = vpop.permute.xlu0 %490
    %v493 = vmul.f32 %v486, %v491
    %495 = vrot.lane.b32.xlu0 %v493, 32
    %v496 = vpop.permute.xlu0 %495
    %v498 = vadd.f32 %v488, %v496
    %v499 = vtanh.pop %v498
    %501 = vrot.lane.b32.xlu0 %v499, 64
    %v502 = vpop.permute.xlu0 %501
    %v504 = vmul.f32 %v486, %v502
    %506 = vrot.lane.b32.xlu0 %v504, 32
    %v507 = vpop.permute.xlu0 %506
    %510 = vrot.lane.b32.xlu0 %v432, 64
    %v511 = vpop.permute.xlu0 %510
    %v513 = vsel %vm242, %v507, %v511
    %v514 = vpack.c.bf16 %v513, %v513
    %v516 = vsel %vm198, %v514, 0
    %518 = vmatprep.subr.bf16.mxu0 0
    %519 = vmatpush1.bf16.msra.mxu0 %v358
    %520 = vmatprep.subr.bf16.mxu0 0
    %521 = vmatpush1.bf16.msra.mxu0 %v359
    %522 = vmatprep.subr.bf16.mxu0 0
    %523 = vmatpush1.bf16.msra.mxu0 %v360
    %524 = vmatprep.subr.bf16.mxu0 0
    %525 = vmatpush1.bf16.msra.mxu0 %v361
    %526 = vmatprep.subr.bf16.mxu0 0
    %527 = vmatpush1.bf16.msra.mxu0 0
    %528 = vmatprep.subr.bf16.mxu0 0
    %529 = vmatpush1.bf16.msra.mxu0 0
    %530 = vmatprep.subr.bf16.mxu0 0
    %531 = vmatpush1.bf16.msra.mxu0 0
    %532 = vmatprep.subr.bf16.mxu0 0
    %533 = vmatpush1.bf16.msra.mxu0 0
    %534 = vmatprep.subr.bf16.mxu0 0
    %535 = vmatpush1.bf16.msra.mxu0 0
    %536 = vmatprep.subr.bf16.mxu0 0
    %537 = vmatpush1.bf16.msra.mxu0 0
    %538 = vmatprep.subr.bf16.mxu0 0
    %539 = vmatpush1.bf16.msra.mxu0 0
    %540 = vmatprep.subr.bf16.mxu0 0
    %541 = vmatpush1.bf16.msra.mxu0 0
    %542 = vmatprep.subr.bf16.mxu0 0
    %543 = vmatpush1.bf16.msra.mxu0 0
    %544 = vmatprep.subr.bf16.mxu0 0
    %545 = vmatpush1.bf16.msra.mxu0 0
    %546 = vmatprep.subr.bf16.mxu0 0
    %547 = vmatpush1.bf16.msra.mxu0 0
    %548 = vmatprep.subr.bf16.mxu0 0
    %549 = vmatpush1.bf16.msra.mxu0 0
    %550 = vmatprep.mubr.bf16.mxu0 0
    %551 = vmatmul.mubr.bf16.gmra.mrb[0].mxu0 %v516
    %v552 = vpop.f32.mrb[0].mxu0
    %v553 = vadd.f32 0.0, %v552
    %v554 = vpop.f32.mrb[0].mxu0
    %v555 = vpop.f32.mrb[0].mxu0
    %v556 = vpop.f32.mrb[0].mxu0
    %557 = vdwg.mxu0
    %v558 = vxor.u32 %v553, 2147483648
    %v559 = vmul.f32 %v558, 1.442695
    %v560 = vpow.pop %v559
    %v561 = vadd.f32 %v560, 1.0
    %v562 = vrcp.pop %v561
    %v563 = vmul.f32 1.0, %v562
    %v564 = vtanh.pop %v553
    %v565 = vmul.f32 %v563, %v426
    %567 = vrot.lane.b32.xlu0 %v564, 64
    %v568 = vpop.permute.xlu0 %567
    %v570 = vmul.f32 %v563, %v568
    %572 = vrot.lane.b32.xlu0 %v570, 32
    %v573 = vpop.permute.xlu0 %572
    %v575 = vadd.f32 %v565, %v573
    %v576 = vtanh.pop %v575
    %578 = vrot.lane.b32.xlu0 %v576, 64
    %v579 = vpop.permute.xlu0 %578
    %v581 = vmul.f32 %v563, %v579
    %v582 = vrot.slane %v504, 4
    %583 = vrot.lane.b32.xlu0 %v582, 64
    %v584 = vpop.permute.xlu0 %583
    %v586 = vsel %vm242, %v152, %v584
    %v587 = vpack.c.bf16 %v586, %v586
    %v589 = vrot.slane %v587, 2
    %v591 = vsel %vm198, %v589, 0
    %593 = vmatprep.subr.bf16.mxu0 0
    %594 = vmatpush1.bf16.msra.mxu0 %v261
    %595 = vmatprep.subr.bf16.mxu0 0
    %596 = vmatpush1.bf16.msra.mxu0 %v262
    %597 = vmatprep.subr.bf16.mxu0 0
    %598 = vmatpush1.bf16.msra.mxu0 %v263
    %599 = vmatprep.subr.bf16.mxu0 0
    %600 = vmatpush1.bf16.msra.mxu0 %v264
    %601 = vmatprep.subr.bf16.mxu0 0
    %602 = vmatpush1.bf16.msra.mxu0 0
    %603 = vmatprep.subr.bf16.mxu0 0
    %604 = vmatpush1.bf16.msra.mxu0 0
    %605 = vmatprep.subr.bf16.mxu0 0
    %606 = vmatpush1.bf16.msra.mxu0 0
    %607 = vmatprep.subr.bf16.mxu0 0
    %608 = vmatpush1.bf16.msra.mxu0 0
    %609 = vmatprep.subr.bf16.mxu0 0
    %610 = vmatpush1.bf16.msra.mxu0 0
    %611 = vmatprep.subr.bf16.mxu0 0
    %612 = vmatpush1.bf16.msra.mxu0 0
    %613 = vmatprep.subr.bf16.mxu0 0
    %614 = vmatpush1.bf16.msra.mxu0 0
    %615 = vmatprep.subr.bf16.mxu0 0
    %616 = vmatpush1.bf16.msra.mxu0 0
    %617 = vmatprep.subr.bf16.mxu0 0
    %618 = vmatpush1.bf16.msra.mxu0 0
    %619 = vmatprep.subr.bf16.mxu0 0
    %620 = vmatpush1.bf16.msra.mxu0 0
    %621 = vmatprep.subr.bf16.mxu0 0
    %622 = vmatpush1.bf16.msra.mxu0 0
    %623 = vmatprep.subr.bf16.mxu0 0
    %624 = vmatpush1.bf16.msra.mxu0 0
    %625 = vmatprep.mubr.bf16.mxu0 0
    %626 = vmatmul.mubr.bf16.gmra.mrb[0].mxu0 %v591
    %v627 = vpop.f32.mrb[0].mxu0
    %v628 = vadd.f32 0.0, %v627
    %v629 = vpop.f32.mrb[0].mxu0
    %v630 = vpop.f32.mrb[0].mxu0
    %v631 = vpop.f32.mrb[0].mxu0
    %632 = vdwg.mxu0
    %v633 = vxor.u32 %v628, 2147483648
    %v634 = vmul.f32 %v633, 1.442695
    %v635 = vpow.pop %v634
    %v636 = vadd.f32 %v635, 1.0
    %v637 = vrcp.pop %v636
    %v638 = vmul.f32 1.0, %v637
    %v639 = vtanh.pop %v628
    %v640 = vmul.f32 %v638, %v498
    %642 = vrot.lane.b32.xlu0 %v639, 64
    %v643 = vpop.permute.xlu0 %642
    %v645 = vmul.f32 %v638, %v643
    %647 = vrot.lane.b32.xlu0 %v645, 32
    %v648 = vpop.permute.xlu0 %647
    %v650 = vadd.f32 %v640, %v648
    %v651 = vtanh.pop %v650
    %653 = vrot.lane.b32.xlu0 %v651, 64
    %v654 = vpop.permute.xlu0 %653
    %v656 = vmul.f32 %v638, %v654
    %658 = vrot.lane.b32.xlu0 %v656, 32
    %v659 = vpop.permute.xlu0 %658
    %662 = vrot.lane.b32.xlu0 %v581, 64
    %v663 = vpop.permute.xlu0 %662
    %v665 = vsel %vm242, %v659, %v663
    %v666 = vpack.c.bf16 %v665, %v665
    %v668 = vsel %vm198, %v666, 0
    %670 = vmatprep.subr.bf16.mxu0 0
    %671 = vmatpush1.bf16.msra.mxu0 %v358
    %672 = vmatprep.subr.bf16.mxu0 0
    %673 = vmatpush1.bf16.msra.mxu0 %v359
    %674 = vmatprep.subr.bf16.mxu0 0
    %675 = vmatpush1.bf16.msra.mxu0 %v360
    %676 = vmatprep.subr.bf16.mxu0 0
    %677 = vmatpush1.bf16.msra.mxu0 %v361
    %678 = vmatprep.subr.bf16.mxu0 0
    %679 = vmatpush1.bf16.msra.mxu0 0
    %680 = vmatprep.subr.bf16.mxu0 0
    %681 = vmatpush1.bf16.msra.mxu0 0
    %682 = vmatprep.subr.bf16.mxu0 0
    %683 = vmatpush1.bf16.msra.mxu0 0
    %684 = vmatprep.subr.bf16.mxu0 0
    %685 = vmatpush1.bf16.msra.mxu0 0
    %686 = vmatprep.subr.bf16.mxu0 0
    %687 = vmatpush1.bf16.msra.mxu0 0
    %688 = vmatprep.subr.bf16.mxu0 0
    %689 = vmatpush1.bf16.msra.mxu0 0
    %690 = vmatprep.subr.bf16.mxu0 0
    %691 = vmatpush1.bf16.msra.mxu0 0
    %692 = vmatprep.subr.bf16.mxu0 0
    %693 = vmatpush1.bf16.msra.mxu0 0
    %694 = vmatprep.subr.bf16.mxu0 0
    %695 = vmatpush1.bf16.msra.mxu0 0
    %696 = vmatprep.subr.bf16.mxu0 0
    %697 = vmatpush1.bf16.msra.mxu0 0
    %698 = vmatprep.subr.bf16.mxu0 0
    %699 = vmatpush1.bf16.msra.mxu0 0
    %700 = vmatprep.subr.bf16.mxu0 0
    %701 = vmatpush1.bf16.msra.mxu0 0
    %702 = vmatprep.mubr.bf16.mxu0 0
    %703 = vmatmul.mubr.bf16.gmra.mrb[0].mxu0 %v668
    %v704 = vpop.f32.mrb[0].mxu0
    %v705 = vadd.f32 0.0, %v704
    %v706 = vpop.f32.mrb[0].mxu0
    %v707 = vpop.f32.mrb[0].mxu0
    %v708 = vpop.f32.mrb[0].mxu0
    %709 = vdwg.mxu0
    %v710 = vxor.u32 %v705, 2147483648
    %v711 = vmul.f32 %v710, 1.442695
    %v712 = vpow.pop %v711
    %v713 = vadd.f32 %v712, 1.0
    %v714 = vrcp.pop %v713
    %v715 = vmul.f32 1.0, %v714
    %v716 = vtanh.pop %v705
    %v717 = vmul.f32 %v715, %v575
    %719 = vrot.lane.b32.xlu0 %v716, 64
    %v720 = vpop.permute.xlu0 %719
    %v722 = vmul.f32 %v715, %v720
    %724 = vrot.lane.b32.xlu0 %v722, 32
    %v725 = vpop.permute.xlu0 %724
    %v727 = vadd.f32 %v717, %v725
    %v728 = vtanh.pop %v727
    %730 = vrot.lane.b32.xlu0 %v728, 64
    %v731 = vpop.permute.xlu0 %730
    %v733 = vmul.f32 %v715, %v731
    %734 = vrot.lane.b32.xlu0 %v656, 64
    %v735 = vpop.permute.xlu0 %734
    %v737 = vsel %vm242, %v155, %v735
    %v738 = vpack.c.bf16 %v737, %v737
    %v740 = vsel %vm198, %v738, 0
    %742 = vmatprep.subr.bf16.mxu0 0
    %743 = vmatpush1.bf16.msra.mxu0 %v261
    %744 = vmatprep.subr.bf16.mxu0 0
    %745 = vmatpush1.bf16.msra.mxu0 %v262
    %746 = vmatprep.subr.bf16.mxu0 0
    %747 = vmatpush1.bf16.msra.mxu0 %v263
    %748 = vmatprep.subr.bf16.mxu0 0
    %749 = vmatpush1.bf16.msra.mxu0 %v264
    %750 = vmatprep.subr.bf16.mxu0 0
    %751 = vmatpush1.bf16.msra.mxu0 0
    %752 = vmatprep.subr.bf16.mxu0 0
    %753 = vmatpush1.bf16.msra.mxu0 0
    %754 = vmatprep.subr.bf16.mxu0 0
    %755 = vmatpush1.bf16.msra.mxu0 0
    %756 = vmatprep.subr.bf16.mxu0 0
    %757 = vmatpush1.bf16.msra.mxu0 0
    %758 = vmatprep.subr.bf16.mxu0 0
    %759 = vmatpush1.bf16.msra.mxu0 0
    %760 = vmatprep.subr.bf16.mxu0 0
    %761 = vmatpush1.bf16.msra.mxu0 0
    %762 = vmatprep.subr.bf16.mxu0 0
    %763 = vmatpush1.bf16.msra.mxu0 0
    %764 = vmatprep.subr.bf16.mxu0 0
    %765 = vmatpush1.bf16.msra.mxu0 0
    %766 = vmatprep.subr.bf16.mxu0 0
    %767 = vmatpush1.bf16.msra.mxu0 0
    %768 = vmatprep.subr.bf16.mxu0 0
    %769 = vmatpush1.bf16.msra.mxu0 0
    %770 = vmatprep.subr.bf16.mxu0 0
    %771 = vmatpush1.bf16.msra.mxu0 0
    %772 = vmatprep.subr.bf16.mxu0 0
    %773 = vmatpush1.bf16.msra.mxu0 0
    %774 = vmatprep.mubr.bf16.mxu0 0
    %775 = vmatmul.mubr.bf16.gmra.mrb[0].mxu0 %v740
    %v776 = vpop.f32.mrb[0].mxu0
    %v777 = vadd.f32 0.0, %v776
    %v778 = vpop.f32.mrb[0].mxu0
    %v779 = vpop.f32.mrb[0].mxu0
    %v780 = vpop.f32.mrb[0].mxu0
    %781 = vdwg.mxu0
    %v782 = vxor.u32 %v777, 2147483648
    %v783 = vmul.f32 %v782, 1.442695
    %v784 = vpow.pop %v783
    %v785 = vadd.f32 %v784, 1.0
    %v786 = vrcp.pop %v785
    %v787 = vmul.f32 1.0, %v786
    %v788 = vtanh.pop %v777
    %v789 = vmul.f32 %v787, %v650
    %791 = vrot.lane.b32.xlu0 %v788, 64
    %v792 = vpop.permute.xlu0 %791
    %v794 = vmul.f32 %v787, %v792
    %796 = vrot.lane.b32.xlu0 %v794, 32
    %v797 = vpop.permute.xlu0 %796
    %v799 = vadd.f32 %v789, %v797
    %v800 = vtanh.pop %v799
    %802 = vrot.lane.b32.xlu0 %v800, 64
    %v803 = vpop.permute.xlu0 %802
    %v805 = vmul.f32 %v787, %v803
    %807 = vrot.lane.b32.xlu0 %v805, 32
    %v808 = vpop.permute.xlu0 %807
    %811 = vrot.lane.b32.xlu0 %v733, 64
    %v812 = vpop.permute.xlu0 %811
    %v814 = vsel %vm242, %v808, %v812
    %v815 = vpack.c.bf16 %v814, %v814
    %v817 = vsel %vm198, %v815, 0
    %819 = vmatprep.subr.bf16.mxu0 0
    %820 = vmatpush1.bf16.msra.mxu0 %v358
    %821 = vmatprep.subr.bf16.mxu0 0
    %822 = vmatpush1.bf16.msra.mxu0 %v359
    %823 = vmatprep.subr.bf16.mxu0 0
    %824 = vmatpush1.bf16.msra.mxu0 %v360
    %825 = vmatprep.subr.bf16.mxu0 0
    %826 = vmatpush1.bf16.msra.mxu0 %v361
    %827 = vmatprep.subr.bf16.mxu0 0
    %828 = vmatpush1.bf16.msra.mxu0 0
    %829 = vmatprep.subr.bf16.mxu0 0
    %830 = vmatpush1.bf16.msra.mxu0 0
    %831 = vmatprep.subr.bf16.mxu0 0
    %832 = vmatpush1.bf16.msra.mxu0 0
    %833 = vmatprep.subr.bf16.mxu0 0
    %834 = vmatpush1.bf16.msra.mxu0 0
    %835 = vmatprep.subr.bf16.mxu0 0
    %836 = vmatpush1.bf16.msra.mxu0 0
    %837 = vmatprep.subr.bf16.mxu0 0
    %838 = vmatpush1.bf16.msra.mxu0 0
    %839 = vmatprep.subr.bf16.mxu0 0
    %840 = vmatpush1.bf16.msra.mxu0 0
    %841 = vmatprep.subr.bf16.mxu0 0
    %842 = vmatpush1.bf16.msra.mxu0 0
    %843 = vmatprep.subr.bf16.mxu0 0
    %844 = vmatpush1.bf16.msra.mxu0 0
    %845 = vmatprep.subr.bf16.mxu0 0
    %846 = vmatpush1.bf16.msra.mxu0 0
    %847 = vmatprep.subr.bf16.mxu0 0
    %848 = vmatpush1.bf16.msra.mxu0 0
    %849 = vmatprep.subr.bf16.mxu0 0
    %850 = vmatpush1.bf16.msra.mxu0 0
    %851 = vmatprep.mubr.bf16.mxu0 0
    %852 = vmatmul.mubr.bf16.gmra.mrb[0].mxu0 %v817
    %v853 = vpop.f32.mrb[0].mxu0
    %v854 = vadd.f32 0.0, %v853
    %v855 = vpop.f32.mrb[0].mxu0
    %v856 = vpop.f32.mrb[0].mxu0
    %v857 = vpop.f32.mrb[0].mxu0
    %858 = vdwg.mxu0
    %v859 = vxor.u32 %v854, 2147483648
    %v860 = vmul.f32 %v859, 1.442695
    %v861 = vpow.pop %v860
    %v862 = vadd.f32 %v861, 1.0
    %v863 = vrcp.pop %v862
    %v864 = vmul.f32 1.0, %v863
    %v865 = vtanh.pop %v854
    %v866 = vmul.f32 %v864, %v727
    %868 = vrot.lane.b32.xlu0 %v865, 64
    %v869 = vpop.permute.xlu0 %868
    %v871 = vmul.f32 %v864, %v869
    %873 = vrot.lane.b32.xlu0 %v871, 32
    %v874 = vpop.permute.xlu0 %873
    %v876 = vadd.f32 %v866, %v874
    %v877 = vtanh.pop %v876
    %879 = vrot.lane.b32.xlu0 %v877, 64
    %v880 = vpop.permute.xlu0 %879
    %v882 = vmul.f32 %v864, %v880
    %v883 = vrot.slane %v805, 4
    %884 = vrot.lane.b32.xlu0 %v883, 64
    %v885 = vpop.permute.xlu0 %884
    %v887 = vsel %vm242, %v155, %v885
    %v888 = vpack.c.bf16 %v887, %v887
    %v890 = vrot.slane %v888, 2
    %v892 = vsel %vm198, %v890, 0
    %894 = vmatprep.subr.bf16.mxu0 0
    %895 = vmatpush1.bf16.msra.mxu0 %v261
    %896 = vmatprep.subr.bf16.mxu0 0
    %897 = vmatpush1.bf16.msra.mxu0 %v262
    %898 = vmatprep.subr.bf16.mxu0 0
    %899 = vmatpush1.bf16.msra.mxu0 %v263
    %900 = vmatprep.subr.bf16.mxu0 0
    %901 = vmatpush1.bf16.msra.mxu0 %v264
    %902 = vmatprep.subr.bf16.mxu0 0
    %903 = vmatpush1.bf16.msra.mxu0 0
    %904 = vmatprep.subr.bf16.mxu0 0
    %905 = vmatpush1.bf16.msra.mxu0 0
    %906 = vmatprep.subr.bf16.mxu0 0
    %907 = vmatpush1.bf16.msra.mxu0 0
    %908 = vmatprep.subr.bf16.mxu0 0
    %909 = vmatpush1.bf16.msra.mxu0 0
    %910 = vmatprep.subr.bf16.mxu0 0
    %911 = vmatpush1.bf16.msra.mxu0 0
    %912 = vmatprep.subr.bf16.mxu0 0
    %913 = vmatpush1.bf16.msra.mxu0 0
    %914 = vmatprep.subr.bf16.mxu0 0
    %915 = vmatpush1.bf16.msra.mxu0 0
    %916 = vmatprep.subr.bf16.mxu0 0
    %917 = vmatpush1.bf16.msra.mxu0 0
    %918 = vmatprep.subr.bf16.mxu0 0
    %919 = vmatpush1.bf16.msra.mxu0 0
    %920 = vmatprep.subr.bf16.mxu0 0
    %921 = vmatpush1.bf16.msra.mxu0 0
    %922 = vmatprep.subr.bf16.mxu0 0
    %923 = vmatpush1.bf16.msra.mxu0 0
    %924 = vmatprep.subr.bf16.mxu0 0
    %925 = vmatpush1.bf16.msra.mxu0 0
    %926 = vmatprep.mubr.bf16.mxu0 0
    %927 = vmatmul.mubr.bf16.gmra.mrb[0].mxu0 %v892
    %v928 = vpop.f32.mrb[0].mxu0
    %v929 = vadd.f32 0.0, %v928
    %v930 = vpop.f32.mrb[0].mxu0
    %v931 = vpop.f32.mrb[0].mxu0
    %v932 = vpop.f32.mrb[0].mxu0
    %933 = vdwg.mxu0
    %v934 = vxor.u32 %v929, 2147483648
    %v935 = vmul.f32 %v934, 1.442695
    %v936 = vpow.pop %v935
    %v937 = vadd.f32 %v936, 1.0
    %v938 = vrcp.pop %v937
    %v939 = vmul.f32 1.0, %v938
    %v940 = vtanh.pop %v929
    %v941 = vmul.f32 %v939, %v799
    %943 = vrot.lane.b32.xlu0 %v940, 64
    %v944 = vpop.permute.xlu0 %943
    %v946 = vmul.f32 %v939, %v944
    %948 = vrot.lane.b32.xlu0 %v946, 32
    %v949 = vpop.permute.xlu0 %948
    %v951 = vadd.f32 %v941, %v949
    %v952 = vtanh.pop %v951
    %954 = vrot.lane.b32.xlu0 %v952, 64
    %v955 = vpop.permute.xlu0 %954
    %v957 = vmul.f32 %v939, %v955
    %959 = vrot.lane.b32.xlu0 %v957, 32
    %v960 = vpop.permute.xlu0 %959
    %963 = vrot.lane.b32.xlu0 %v882, 64
    %v964 = vpop.permute.xlu0 %963
    %v966 = vsel %vm242, %v960, %v964
    %v967 = vpack.c.bf16 %v966, %v966
    %v969 = vsel %vm198, %v967, 0
    %971 = vmatprep.subr.bf16.mxu0 0
    %972 = vmatpush1.bf16.msra.mxu0 %v358
    %973 = vmatprep.subr.bf16.mxu0 0
    %974 = vmatpush1.bf16.msra.mxu0 %v359
    %975 = vmatprep.subr.bf16.mxu0 0
    %976 = vmatpush1.bf16.msra.mxu0 %v360
    %977 = vmatprep.subr.bf16.mxu0 0
    %978 = vmatpush1.bf16.msra.mxu0 %v361
    %979 = vmatprep.subr.bf16.mxu0 0
    %980 = vmatpush1.bf16.msra.mxu0 0
    %981 = vmatprep.subr.bf16.mxu0 0
    %982 = vmatpush1.bf16.msra.mxu0 0
    %983 = vmatprep.subr.bf16.mxu0 0
    %984 = vmatpush1.bf16.msra.mxu0 0
    %985 = vmatprep.subr.bf16.mxu0 0
    %986 = vmatpush1.bf16.msra.mxu0 0
    %987 = vmatprep.subr.bf16.mxu0 0
    %988 = vmatpush1.bf16.msra.mxu0 0
    %989 = vmatprep.subr.bf16.mxu0 0
    %990 = vmatpush1.bf16.msra.mxu0 0
    %991 = vmatprep.subr.bf16.mxu0 0
    %992 = vmatpush1.bf16.msra.mxu0 0
    %993 = vmatprep.subr.bf16.mxu0 0
    %994 = vmatpush1.bf16.msra.mxu0 0
    %995 = vmatprep.subr.bf16.mxu0 0
    %996 = vmatpush1.bf16.msra.mxu0 0
    %997 = vmatprep.subr.bf16.mxu0 0
    %998 = vmatpush1.bf16.msra.mxu0 0
    %999 = vmatprep.subr.bf16.mxu0 0
    %1000 = vmatpush1.bf16.msra.mxu0 0
    %1001 = vmatprep.subr.bf16.mxu0 0
    %1002 = vmatpush1.bf16.msra.mxu0 0
    %1003 = vmatprep.mubr.bf16.mxu0 0
    %1004 = vmatmul.mubr.bf16.gmra.mrb[0].mxu0 %v969
    %v1005 = vpop.f32.mrb[0].mxu0
    %v1006 = vadd.f32 0.0, %v1005
    %v1007 = vpop.f32.mrb[0].mxu0
    %v1008 = vpop.f32.mrb[0].mxu0
    %v1009 = vpop.f32.mrb[0].mxu0
    %1010 = vdwg.mxu0
    %v1011 = vxor.u32 %v1006, 2147483648
    %v1012 = vmul.f32 %v1011, 1.442695
    %v1013 = vpow.pop %v1012
    %v1014 = vadd.f32 %v1013, 1.0
    %v1015 = vrcp.pop %v1014
    %v1016 = vmul.f32 1.0, %v1015
    %v1017 = vtanh.pop %v1006
    %v1018 = vmul.f32 %v1016, %v876
    %1020 = vrot.lane.b32.xlu0 %v1017, 64
    %v1021 = vpop.permute.xlu0 %1020
    %v1023 = vmul.f32 %v1016, %v1021
    %1025 = vrot.lane.b32.xlu0 %v1023, 32
    %v1026 = vpop.permute.xlu0 %1025
    %v1028 = vadd.f32 %v1018, %v1026
    %v1029 = vtanh.pop %v1028
    %1031 = vrot.lane.b32.xlu0 %v1029, 64
    %v1032 = vpop.permute.xlu0 %1031
    %v1034 = vmul.f32 %v1016, %v1032
    %1035 = vrot.lane.b32.xlu0 %v957, 64
    %v1036 = vpop.permute.xlu0 %1035
    %v1038 = vsel %vm242, %v160, %v1036
    %v1039 = vpack.c.bf16 %v1038, %v1038
    %v1041 = vsel %vm198, %v1039, 0
    %1043 = vmatprep.subr.bf16.mxu0 0
    %1044 = vmatpush1.bf16.msra.mxu0 %v261
    %1045 = vmatprep.subr.bf16.mxu0 0
    %1046 = vmatpush1.bf16.msra.mxu0 %v262
    %1047 = vmatprep.subr.bf16.mxu0 0
    %1048 = vmatpush1.bf16.msra.mxu0 %v263
    %1049 = vmatprep.subr.bf16.mxu0 0
    %1050 = vmatpush1.bf16.msra.mxu0 %v264
    %1051 = vmatprep.subr.bf16.mxu0 0
    %1052 = vmatpush1.bf16.msra.mxu0 0
    %1053 = vmatprep.subr.bf16.mxu0 0
    %1054 = vmatpush1.bf16.msra.mxu0 0
    %1055 = vmatprep.subr.bf16.mxu0 0
    %1056 = vmatpush1.bf16.msra.mxu0 0
    %1057 = vmatprep.subr.bf16.mxu0 0
    %1058 = vmatpush1.bf16.msra.mxu0 0
    %1059 = vmatprep.subr.bf16.mxu0 0
    %1060 = vmatpush1.bf16.msra.mxu0 0
    %1061 = vmatprep.subr.bf16.mxu0 0
    %1062 = vmatpush1.bf16.msra.mxu0 0
    %1063 = vmatprep.subr.bf16.mxu0 0
    %1064 = vmatpush1.bf16.msra.mxu0 0
    %1065 = vmatprep.subr.bf16.mxu0 0
    %1066 = vmatpush1.bf16.msra.mxu0 0
    %1067 = vmatprep.subr.bf16.mxu0 0
    %1068 = vmatpush1.bf16.msra.mxu0 0
    %1069 = vmatprep.subr.bf16.mxu0 0
    %1070 = vmatpush1.bf16.msra.mxu0 0
    %1071 = vmatprep.subr.bf16.mxu0 0
    %1072 = vmatpush1.bf16.msra.mxu0 0
    %1073 = vmatprep.subr.bf16.mxu0 0
    %1074 = vmatpush1.bf16.msra.mxu0 0
    %1075 = vmatprep.mubr.bf16.mxu0 0
    %1076 = vmatmul.mubr.bf16.gmra.mrb[0].mxu0 %v1041
    %v1077 = vpop.f32.mrb[0].mxu0
    %v1078 = vadd.f32 0.0, %v1077
    %v1079 = vpop.f32.mrb[0].mxu0
    %v1080 = vpop.f32.mrb[0].mxu0
    %v1081 = vpop.f32.mrb[0].mxu0
    %1082 = vdwg.mxu0
    %v1083 = vxor.u32 %v1078, 2147483648
    %v1084 = vmul.f32 %v1083, 1.442695
    %v1085 = vpow.pop %v1084
    %v1086 = vadd.f32 %v1085, 1.0
    %v1087 = vrcp.pop %v1086
    %v1088 = vmul.f32 1.0, %v1087
    %v1089 = vtanh.pop %v1078
    %v1090 = vmul.f32 %v1088, %v951
    %1092 = vrot.lane.b32.xlu0 %v1089, 64
    %v1093 = vpop.permute.xlu0 %1092
    %v1095 = vmul.f32 %v1088, %v1093
    %1097 = vrot.lane.b32.xlu0 %v1095, 32
    %v1098 = vpop.permute.xlu0 %1097
    %v1100 = vadd.f32 %v1090, %v1098
    %v1101 = vtanh.pop %v1100
    %1103 = vrot.lane.b32.xlu0 %v1101, 64
    %v1104 = vpop.permute.xlu0 %1103
    %v1106 = vmul.f32 %v1088, %v1104
    %1108 = vrot.lane.b32.xlu0 %v1106, 32
    %v1109 = vpop.permute.xlu0 %1108
    %1112 = vrot.lane.b32.xlu0 %v1034, 64
    %v1113 = vpop.permute.xlu0 %1112
    %v1115 = vsel %vm242, %v1109, %v1113
    %v1116 = vpack.c.bf16 %v1115, %v1115
    %v1118 = vsel %vm198, %v1116, 0
    %1120 = vmatprep.subr.bf16.mxu0 0
    %1121 = vmatpush1.bf16.msra.mxu0 %v358
    %1122 = vmatprep.subr.bf16.mxu0 0
    %1123 = vmatpush1.bf16.msra.mxu0 %v359
    %1124 = vmatprep.subr.bf16.mxu0 0
    %1125 = vmatpush1.bf16.msra.mxu0 %v360
    %1126 = vmatprep.subr.bf16.mxu0 0
    %1127 = vmatpush1.bf16.msra.mxu0 %v361
    %1128 = vmatprep.subr.bf16.mxu0 0
    %1129 = vmatpush1.bf16.msra.mxu0 0
    %1130 = vmatprep.subr.bf16.mxu0 0
    %1131 = vmatpush1.bf16.msra.mxu0 0
    %1132 = vmatprep.subr.bf16.mxu0 0
    %1133 = vmatpush1.bf16.msra.mxu0 0
    %1134 = vmatprep.subr.bf16.mxu0 0
    %1135 = vmatpush1.bf16.msra.mxu0 0
    %1136 = vmatprep.subr.bf16.mxu0 0
    %1137 = vmatpush1.bf16.msra.mxu0 0
    %1138 = vmatprep.subr.bf16.mxu0 0
    %1139 = vmatpush1.bf16.msra.mxu0 0
    %1140 = vmatprep.subr.bf16.mxu0 0
    %1141 = vmatpush1.bf16.msra.mxu0 0
    %1142 = vmatprep.subr.bf16.mxu0 0
    %1143 = vmatpush1.bf16.msra.mxu0 0
    %1144 = vmatprep.subr.bf16.mxu0 0
    %1145 = vmatpush1.bf16.msra.mxu0 0
    %1146 = vmatprep.subr.bf16.mxu0 0
    %1147 = vmatpush1.bf16.msra.mxu0 0
    %1148 = vmatprep.subr.bf16.mxu0 0
    %1149 = vmatpush1.bf16.msra.mxu0 0
    %1150 = vmatprep.subr.bf16.mxu0 0
    %1151 = vmatpush1.bf16.msra.mxu0 0
    %1152 = vmatprep.mubr.bf16.mxu0 0
    %1153 = vmatmul.mubr.bf16.gmra.mrb[0].mxu0 %v1118
    %v1154 = vpop.f32.mrb[0].mxu0
    %v1155 = vadd.f32 0.0, %v1154
    %v1156 = vpop.f32.mrb[0].mxu0
    %v1157 = vpop.f32.mrb[0].mxu0
    %v1158 = vpop.f32.mrb[0].mxu0
    %1159 = vdwg.mxu0
    %v1160 = vxor.u32 %v1155, 2147483648
    %v1161 = vmul.f32 %v1160, 1.442695
    %v1162 = vpow.pop %v1161
    %v1163 = vadd.f32 %v1162, 1.0
    %v1164 = vrcp.pop %v1163
    %v1165 = vmul.f32 1.0, %v1164
    %v1166 = vtanh.pop %v1155
    %v1167 = vmul.f32 %v1165, %v1028
    %1169 = vrot.lane.b32.xlu0 %v1166, 64
    %v1170 = vpop.permute.xlu0 %1169
    %v1172 = vmul.f32 %v1165, %v1170
    %1174 = vrot.lane.b32.xlu0 %v1172, 32
    %v1175 = vpop.permute.xlu0 %1174
    %v1177 = vadd.f32 %v1167, %v1175
    %v1178 = vtanh.pop %v1177
    %1180 = vrot.lane.b32.xlu0 %v1178, 64
    %v1181 = vpop.permute.xlu0 %1180
    %v1183 = vmul.f32 %v1165, %v1181
    %v1184 = vrot.slane %v1106, 4
    %1185 = vrot.lane.b32.xlu0 %v1184, 64
    %v1186 = vpop.permute.xlu0 %1185
    %v1188 = vsel %vm242, %v160, %v1186
    %v1189 = vpack.c.bf16 %v1188, %v1188
    %v1191 = vrot.slane %v1189, 2
    %v1193 = vsel %vm198, %v1191, 0
    %1195 = vmatprep.subr.bf16.mxu0 0
    %1196 = vmatpush1.bf16.msra.mxu0 %v261
    %1197 = vmatprep.subr.bf16.mxu0 0
    %1198 = vmatpush1.bf16.msra.mxu0 %v262
    %1199 = vmatprep.subr.bf16.mxu0 0
    %1200 = vmatpush1.bf16.msra.mxu0 %v263
    %1201 = vmatprep.subr.bf16.mxu0 0
    %1202 = vmatpush1.bf16.msra.mxu0 %v264
    %1203 = vmatprep.subr.bf16.mxu0 0
    %1204 = vmatpush1.bf16.msra.mxu0 0
    %1205 = vmatprep.subr.bf16.mxu0 0
    %1206 = vmatpush1.bf16.msra.mxu0 0
    %1207 = vmatprep.subr.bf16.mxu0 0
    %1208 = vmatpush1.bf16.msra.mxu0 0
    %1209 = vmatprep.subr.bf16.mxu0 0
    %1210 = vmatpush1.bf16.msra.mxu0 0
    %1211 = vmatprep.subr.bf16.mxu0 0
    %1212 = vmatpush1.bf16.msra.mxu0 0
    %1213 = vmatprep.subr.bf16.mxu0 0
    %1214 = vmatpush1.bf16.msra.mxu0 0
    %1215 = vmatprep.subr.bf16.mxu0 0
    %1216 = vmatpush1.bf16.msra.mxu0 0
    %1217 = vmatprep.subr.bf16.mxu0 0
    %1218 = vmatpush1.bf16.msra.mxu0 0
    %1219 = vmatprep.subr.bf16.mxu0 0
    %1220 = vmatpush1.bf16.msra.mxu0 0
    %1221 = vmatprep.subr.bf16.mxu0 0
    %1222 = vmatpush1.bf16.msra.mxu0 0
    %1223 = vmatprep.subr.bf16.mxu0 0
    %1224 = vmatpush1.bf16.msra.mxu0 0
    %1225 = vmatprep.subr.bf16.mxu0 0
    %1226 = vmatpush1.bf16.msra.mxu0 0
    %1227 = vmatprep.mubr.bf16.mxu0 0
    %1228 = vmatmul.mubr.bf16.gmra.mrb[0].mxu0 %v1193
    %v1229 = vpop.f32.mrb[0].mxu0
    %v1230 = vadd.f32 0.0, %v1229
    %v1231 = vpop.f32.mrb[0].mxu0
    %v1232 = vpop.f32.mrb[0].mxu0
    %v1233 = vpop.f32.mrb[0].mxu0
    %1234 = vdwg.mxu0
    %v1235 = vxor.u32 %v1230, 2147483648
    %v1236 = vmul.f32 %v1235, 1.442695
    %v1237 = vpow.pop %v1236
    %v1238 = vadd.f32 %v1237, 1.0
    %v1239 = vrcp.pop %v1238
    %v1240 = vmul.f32 1.0, %v1239
    %v1241 = vtanh.pop %v1230
    %v1242 = vmul.f32 %v1240, %v1100
    %1244 = vrot.lane.b32.xlu0 %v1241, 64
    %v1245 = vpop.permute.xlu0 %1244
    %v1247 = vmul.f32 %v1240, %v1245
    %1249 = vrot.lane.b32.xlu0 %v1247, 32
    %v1250 = vpop.permute.xlu0 %1249
    %v1252 = vadd.f32 %v1242, %v1250
    %v1253 = vtanh.pop %v1252
    %1255 = vrot.lane.b32.xlu0 %v1253, 64
    %v1256 = vpop.permute.xlu0 %1255
    %v1258 = vmul.f32 %v1240, %v1256
    %1260 = vrot.lane.b32.xlu0 %v1258, 32
    %v1261 = vpop.permute.xlu0 %1260
    %1264 = vrot.lane.b32.xlu0 %v1183, 64
    %v1265 = vpop.permute.xlu0 %1264
    %v1267 = vsel %vm242, %v1261, %v1265
    %v1268 = vpack.c.bf16 %v1267, %v1267
    %v1270 = vsel %vm198, %v1268, 0
    %1272 = vmatprep.subr.bf16.mxu0 0
    %1273 = vmatpush1.bf16.msra.mxu0 %v358
    %1274 = vmatprep.subr.bf16.mxu0 0
    %1275 = vmatpush1.bf16.msra.mxu0 %v359
    %1276 = vmatprep.subr.bf16.mxu0 0
    %1277 = vmatpush1.bf16.msra.mxu0 %v360
    %1278 = vmatprep.subr.bf16.mxu0 0
    %1279 = vmatpush1.bf16.msra.mxu0 %v361
    %1280 = vmatprep.subr.bf16.mxu0 0
    %1281 = vmatpush1.bf16.msra.mxu0 0
    %1282 = vmatprep.subr.bf16.mxu0 0
    %1283 = vmatpush1.bf16.msra.mxu0 0
    %1284 = vmatprep.subr.bf16.mxu0 0
    %1285 = vmatpush1.bf16.msra.mxu0 0
    %1286 = vmatprep.subr.bf16.mxu0 0
    %1287 = vmatpush1.bf16.msra.mxu0 0
    %1288 = vmatprep.subr.bf16.mxu0 0
    %1289 = vmatpush1.bf16.msra.mxu0 0
    %1290 = vmatprep.subr.bf16.mxu0 0
    %1291 = vmatpush1.bf16.msra.mxu0 0
    %1292 = vmatprep.subr.bf16.mxu0 0
    %1293 = vmatpush1.bf16.msra.mxu0 0
    %1294 = vmatprep.subr.bf16.mxu0 0
    %1295 = vmatpush1.bf16.msra.mxu0 0
    %1296 = vmatprep.subr.bf16.mxu0 0
    %1297 = vmatpush1.bf16.msra.mxu0 0
    %1298 = vmatprep.subr.bf16.mxu0 0
    %1299 = vmatpush1.bf16.msra.mxu0 0
    %1300 = vmatprep.subr.bf16.mxu0 0
    %1301 = vmatpush1.bf16.msra.mxu0 0
    %1302 = vmatprep.subr.bf16.mxu0 0
    %1303 = vmatpush1.bf16.msra.mxu0 0
    %1304 = vmatprep.mubr.bf16.mxu0 0
    %1305 = vmatmul.mubr.bf16.gmra.mrb[0].mxu0 %v1270
    %v1306 = vpop.f32.mrb[0].mxu0
    %v1307 = vadd.f32 0.0, %v1306
    %v1308 = vpop.f32.mrb[0].mxu0
    %v1309 = vpop.f32.mrb[0].mxu0
    %v1310 = vpop.f32.mrb[0].mxu0
    %1311 = vdwg.mxu0
    %v1312 = vxor.u32 %v1307, 2147483648
    %v1313 = vmul.f32 %v1312, 1.442695
    %v1314 = vpow.pop %v1313
    %v1315 = vadd.f32 %v1314, 1.0
    %v1316 = vrcp.pop %v1315
    %v1317 = vmul.f32 1.0, %v1316
    %v1318 = vtanh.pop %v1307
    %v1319 = vmul.f32 %v1317, %v1177
    %1321 = vrot.lane.b32.xlu0 %v1318, 64
    %v1322 = vpop.permute.xlu0 %1321
    %v1324 = vmul.f32 %v1317, %v1322
    %1326 = vrot.lane.b32.xlu0 %v1324, 32
    %v1327 = vpop.permute.xlu0 %1326
    %v1329 = vadd.f32 %v1319, %v1327
    %v1330 = vtanh.pop %v1329
    %1332 = vrot.lane.b32.xlu0 %v1330, 64
    %v1333 = vpop.permute.xlu0 %1332
    %v1335 = vmul.f32 %v1317, %v1333
    %1336 = vrot.lane.b32.xlu0 %v1258, 64
    %v1337 = vpop.permute.xlu0 %1336
    %v1339 = vsel %vm242, %v163, %v1337
    %v1340 = vpack.c.bf16 %v1339, %v1339
    %v1342 = vsel %vm198, %v1340, 0
    %1344 = vmatprep.subr.bf16.mxu0 0
    %1345 = vmatpush1.bf16.msra.mxu0 %v261
    %1346 = vmatprep.subr.bf16.mxu0 0
    %1347 = vmatpush1.bf16.msra.mxu0 %v262
    %1348 = vmatprep.subr.bf16.mxu0 0
    %1349 = vmatpush1.bf16.msra.mxu0 %v263
    %1350 = vmatprep.subr.bf16.mxu0 0
    %1351 = vmatpush1.bf16.msra.mxu0 %v264
    %1352 = vmatprep.subr.bf16.mxu0 0
    %1353 = vmatpush1.bf16.msra.mxu0 0
    %1354 = vmatprep.subr.bf16.mxu0 0
    %1355 = vmatpush1.bf16.msra.mxu0 0
    %1356 = vmatprep.subr.bf16.mxu0 0
    %1357 = vmatpush1.bf16.msra.mxu0 0
    %1358 = vmatprep.subr.bf16.mxu0 0
    %1359 = vmatpush1.bf16.msra.mxu0 0
    %1360 = vmatprep.subr.bf16.mxu0 0
    %1361 = vmatpush1.bf16.msra.mxu0 0
    %1362 = vmatprep.subr.bf16.mxu0 0
    %1363 = vmatpush1.bf16.msra.mxu0 0
    %1364 = vmatprep.subr.bf16.mxu0 0
    %1365 = vmatpush1.bf16.msra.mxu0 0
    %1366 = vmatprep.subr.bf16.mxu0 0
    %1367 = vmatpush1.bf16.msra.mxu0 0
    %1368 = vmatprep.subr.bf16.mxu0 0
    %1369 = vmatpush1.bf16.msra.mxu0 0
    %1370 = vmatprep.subr.bf16.mxu0 0
    %1371 = vmatpush1.bf16.msra.mxu0 0
    %1372 = vmatprep.subr.bf16.mxu0 0
    %1373 = vmatpush1.bf16.msra.mxu0 0
    %1374 = vmatprep.subr.bf16.mxu0 0
    %1375 = vmatpush1.bf16.msra.mxu0 0
    %1376 = vmatprep.mubr.bf16.mxu0 0
    %1377 = vmatmul.mubr.bf16.gmra.mrb[0].mxu0 %v1342
    %v1378 = vpop.f32.mrb[0].mxu0
    %v1379 = vadd.f32 0.0, %v1378
    %v1380 = vpop.f32.mrb[0].mxu0
    %v1381 = vpop.f32.mrb[0].mxu0
    %v1382 = vpop.f32.mrb[0].mxu0
    %1383 = vdwg.mxu0
    %v1384 = vxor.u32 %v1379, 2147483648
    %v1385 = vmul.f32 %v1384, 1.442695
    %v1386 = vpow.pop %v1385
    %v1387 = vadd.f32 %v1386, 1.0
    %v1388 = vrcp.pop %v1387
    %v1389 = vmul.f32 1.0, %v1388
    %v1390 = vtanh.pop %v1379
    %v1391 = vmul.f32 %v1389, %v1252
    %1393 = vrot.lane.b32.xlu0 %v1390, 64
    %v1394 = vpop.permute.xlu0 %1393
    %v1396 = vmul.f32 %v1389, %v1394
    %1398 = vrot.lane.b32.xlu0 %v1396, 32
    %v1399 = vpop.permute.xlu0 %1398
    %v1401 = vadd.f32 %v1391, %v1399
    %v1402 = vtanh.pop %v1401
    %1404 = vrot.lane.b32.xlu0 %v1402, 64
    %v1405 = vpop.permute.xlu0 %1404
    %v1407 = vmul.f32 %v1389, %v1405
    %1409 = vrot.lane.b32.xlu0 %v1407, 32
    %v1410 = vpop.permute.xlu0 %1409
    %1413 = vrot.lane.b32.xlu0 %v1335, 64
    %v1414 = vpop.permute.xlu0 %1413
    %v1416 = vsel %vm242, %v1410, %v1414
    %v1417 = vpack.c.bf16 %v1416, %v1416
    %v1419 = vsel %vm198, %v1417, 0
    %1421 = vmatprep.subr.bf16.mxu0 0
    %1422 = vmatpush1.bf16.msra.mxu0 %v358
    %1423 = vmatprep.subr.bf16.mxu0 0
    %1424 = vmatpush1.bf16.msra.mxu0 %v359
    %1425 = vmatprep.subr.bf16.mxu0 0
    %1426 = vmatpush1.bf16.msra.mxu0 %v360
    %1427 = vmatprep.subr.bf16.mxu0 0
    %1428 = vmatpush1.bf16.msra.mxu0 %v361
    %1429 = vmatprep.subr.bf16.mxu0 0
    %1430 = vmatpush1.bf16.msra.mxu0 0
    %1431 = vmatprep.subr.bf16.mxu0 0
    %1432 = vmatpush1.bf16.msra.mxu0 0
    %1433 = vmatprep.subr.bf16.mxu0 0
    %1434 = vmatpush1.bf16.msra.mxu0 0
    %1435 = vmatprep.subr.bf16.mxu0 0
    %1436 = vmatpush1.bf16.msra.mxu0 0
    %1437 = vmatprep.subr.bf16.mxu0 0
    %1438 = vmatpush1.bf16.msra.mxu0 0
    %1439 = vmatprep.subr.bf16.mxu0 0
    %1440 = vmatpush1.bf16.msra.mxu0 0
    %1441 = vmatprep.subr.bf16.mxu0 0
    %1442 = vmatpush1.bf16.msra.mxu0 0
    %1443 = vmatprep.subr.bf16.mxu0 0
    %1444 = vmatpush1.bf16.msra.mxu0 0
    %1445 = vmatprep.subr.bf16.mxu0 0
    %1446 = vmatpush1.bf16.msra.mxu0 0
    %1447 = vmatprep.subr.bf16.mxu0 0
    %1448 = vmatpush1.bf16.msra.mxu0 0
    %1449 = vmatprep.subr.bf16.mxu0 0
    %1450 = vmatpush1.bf16.msra.mxu0 0
    %1451 = vmatprep.subr.bf16.mxu0 0
    %1452 = vmatpush1.bf16.msra.mxu0 0
    %1453 = vmatprep.mubr.bf16.mxu0 0
    %1454 = vmatmul.mubr.bf16.gmra.mrb[0].mxu0 %v1419
    %v1455 = vpop.f32.mrb[0].mxu0
    %v1456 = vadd.f32 0.0, %v1455
    %v1457 = vpop.f32.mrb[0].mxu0
    %v1458 = vpop.f32.mrb[0].mxu0
    %v1459 = vpop.f32.mrb[0].mxu0
    %1460 = vdwg.mxu0
    %v1461 = vxor.u32 %v1456, 2147483648
    %v1462 = vmul.f32 %v1461, 1.442695
    %v1463 = vpow.pop %v1462
    %v1464 = vadd.f32 %v1463, 1.0
    %v1465 = vrcp.pop %v1464
    %v1466 = vmul.f32 1.0, %v1465
    %v1467 = vtanh.pop %v1456
    %v1468 = vmul.f32 %v1466, %v1329
    %1470 = vrot.lane.b32.xlu0 %v1467, 64
    %v1471 = vpop.permute.xlu0 %1470
    %v1473 = vmul.f32 %v1466, %v1471
    %1475 = vrot.lane.b32.xlu0 %v1473, 32
    %v1476 = vpop.permute.xlu0 %1475
    %v1478 = vadd.f32 %v1468, %v1476
    %v1479 = vtanh.pop %v1478
    %1481 = vrot.lane.b32.xlu0 %v1479, 64
    %v1482 = vpop.permute.xlu0 %1481
    %v1484 = vmul.f32 %v1466, %v1482
    %v1485 = vrot.slane %v733, 4
    %v1487 = vrot.slane %v1034, 4
    %v1489 = vrot.slane %v1335, 4
    %vm1491 = vcmask 1043456
    %v1492 = vsel %vm1491, %v581, %v1485
    %v1493 = vsel %vm1491, %v882, %v1487
    %v1494 = vsel %vm1491, %v1183, %v1489
    %v1496 = vlaneseq
    %v1497 = vshrl.u32 %v1496, 7
    %v1498 = vsub.s32 0, %v1497
    %v1499 = vrot.slane %v68, %v1498
    %1505 = vrot.lane.b32.xlu0 %v1492, 32
    %v1506 = vpop.permute.xlu0 %1505
    %1507 = vrot.lane.b32.xlu0 %v1493, 32
    %v1508 = vpop.permute.xlu0 %1507
    %1509 = vrot.lane.b32.xlu0 %v1494, 32
    %v1510 = vpop.permute.xlu0 %1509
    %1511 = vrot.lane.b32.xlu0 %v1484, 32
    %v1512 = vpop.permute.xlu0 %1511
    %v1513 = vsel %vm242, %v1506, 0
    %v1515 = vsel %vm242, %v1508, 0
    %v1517 = vsel %vm242, %v1510, 0
    %v1519 = vsel %vm242, %v1512, 0
    %1521 = vmatprep.subr.mxu0 0.0
    %1522 = vmatpush1.msra.mxu0 %v64
    %1523 = vmatprep.subr.mxu0 0.0
    %1524 = vmatpush1.msra.mxu0 %v65
    %1525 = vmatprep.subr.mxu0 0.0
    %1526 = vmatpush1.msra.mxu0 %v66
    %1527 = vmatprep.subr.mxu0 0.0
    %1528 = vmatpush1.msra.mxu0 %v67
    %1529 = vmatprep.subr.mxu0 0.0
    %1530 = vmatpush1.msra.mxu0 0.0
    %1531 = vmatprep.subr.mxu0 0.0
    %1532 = vmatpush1.msra.mxu0 0.0
    %1533 = vmatprep.subr.mxu0 0.0
    %1534 = vmatpush1.msra.mxu0 0.0
    %1535 = vmatprep.subr.mxu0 0.0
    %1536 = vmatpush1.msra.mxu0 0.0
    %1537 = vmatprep.subr.mxu0 0.0
    %1538 = vmatpush1.msra.mxu0 0.0
    %1539 = vmatprep.subr.mxu0 0.0
    %1540 = vmatpush1.msra.mxu0 0.0
    %1541 = vmatprep.subr.mxu0 0.0
    %1542 = vmatpush1.msra.mxu0 0.0
    %1543 = vmatprep.subr.mxu0 0.0
    %1544 = vmatpush1.msra.mxu0 0.0
    %1545 = vmatprep.subr.mxu0 0.0
    %1546 = vmatpush1.msra.mxu0 0.0
    %1547 = vmatprep.subr.mxu0 0.0
    %1548 = vmatpush1.msra.mxu0 0.0
    %1549 = vmatprep.subr.mxu0 0.0
    %1550 = vmatpush1.msra.mxu0 0.0
    %1551 = vmatprep.subr.mxu0 0.0
    %1552 = vmatpush1.msra.mxu0 0.0
    %1553 = vmatprep.subr.mxu0 0.0
    %1554 = vmatpush1.msra.mxu0 0.0
    %1555 = vmatprep.subr.mxu0 0.0
    %1556 = vmatpush1.msra.mxu0 0.0
    %1557 = vmatprep.subr.mxu0 0.0
    %1558 = vmatpush1.msra.mxu0 0.0
    %1559 = vmatprep.subr.mxu0 0.0
    %1560 = vmatpush1.msra.mxu0 0.0
    %1561 = vmatprep.subr.mxu0 0.0
    %1562 = vmatpush1.msra.mxu0 0.0
    %1563 = vmatprep.subr.mxu0 0.0
    %1564 = vmatpush1.msra.mxu0 0.0
    %1565 = vmatprep.subr.mxu0 0.0
    %1566 = vmatpush1.msra.mxu0 0.0
    %1567 = vmatprep.subr.mxu0 0.0
    %1568 = vmatpush1.msra.mxu0 0.0
    %1569 = vmatprep.subr.mxu0 0.0
    %1570 = vmatpush1.msra.mxu0 0.0
    %1571 = vmatprep.subr.mxu0 0.0
    %1572 = vmatpush1.msra.mxu0 0.0
    %1573 = vmatprep.subr.mxu0 0.0
    %1574 = vmatpush1.msra.mxu0 0.0
    %1575 = vmatprep.subr.mxu0 0.0
    %1576 = vmatpush1.msra.mxu0 0.0
    %1577 = vmatprep.subr.mxu0 0.0
    %1578 = vmatpush1.msra.mxu0 0.0
    %1579 = vmatprep.subr.mxu0 0.0
    %1580 = vmatpush1.msra.mxu0 0.0
    %1581 = vmatprep.subr.mxu0 0.0
    %1582 = vmatpush1.msra.mxu0 0.0
    %1583 = vmatprep.subr.mxu0 0.0
    %1584 = vmatpush1.msra.mxu0 0.0
    %1585 = vmatprep.mubr.f32.mxu0 0.0
    %1586 = vmatmul.mubr.f32.gmra.mrb[0].mxu0 %v1513
    %v1587 = vpop.f32.mrb[0].mxu0
    %v1588 = vadd.f32 %v1499, %v1587
    %v1589 = vpop.f32.mrb[0].mxu0
    %1590 = vmatprep.mubr.f32.mxu0 0.0
    %1591 = vmatmul.mubr.f32.gmra.mrb[0].mxu0 %v1515
    %v1592 = vpop.f32.mrb[0].mxu0
    %v1593 = vadd.f32 %v1499, %v1592
    %v1594 = vpop.f32.mrb[0].mxu0
    %1595 = vmatprep.mubr.f32.mxu0 0.0
    %1596 = vmatmul.mubr.f32.gmra.mrb[0].mxu0 %v1517
    %v1597 = vpop.f32.mrb[0].mxu0
    %v1598 = vadd.f32 %v1499, %v1597
    %v1599 = vpop.f32.mrb[0].mxu0
    %1600 = vmatprep.mubr.f32.mxu0 0.0
    %1601 = vmatmul.mubr.f32.gmra.mrb[0].mxu0 %v1519
    %v1602 = vpop.f32.mrb[0].mxu0
    %v1603 = vadd.f32 %v1499, %v1602
    %v1604 = vpop.f32.mrb[0].mxu0
    %1605 = vdwg.mxu0
    %v1606 = vsel %vm106, %v1588, -inf
    %1607 = vmax.xlane.f32.xlu0 %v1606
    %v1608 = vpop.xlane.xlu0 %1607
    %v1609 = vsel %vm106, %v1593, -inf
    %1610 = vmax.xlane.f32.xlu0 %v1609
    %v1611 = vpop.xlane.xlu0 %1610
    %v1612 = vsel %vm106, %v1598, -inf
    %1613 = vmax.xlane.f32.xlu0 %v1612
    %v1614 = vpop.xlane.xlu0 %1613
    %vm1615 = vcmask 158720
    %v1616 = vsel %vm1615, %v1603, -inf
    %1617 = vmax.xlane.f32.xlu0 %v1616
    %v1618 = vpop.xlane.xlu0 %1617
    %v1619 = vsub.f32 %v1588, %v1608
    %v1620 = vsub.f32 %v1593, %v1611
    %v1621 = vsub.f32 %v1598, %v1614
    %v1622 = vsub.f32 %v1603, %v1618
    %v1623 = vmul.f32 %v1619, 1.442695
    %v1624 = vpow.pop %v1623
    %v1625 = vmul.f32 %v1620, 1.442695
    %v1626 = vpow.pop %v1625
    %v1627 = vmul.f32 %v1621, 1.442695
    %v1628 = vpow.pop %v1627
    %v1629 = vmul.f32 %v1622, 1.442695
    %v1630 = vpow.pop %v1629
    %v1631 = vsel %vm106, %v1624, 0.0
    %1632 = vadd.xlane.f32.xlu0 %v1631
    %v1633 = vpop.xlane.xlu0 %1632
    %v1634 = vsel %vm106, %v1626, 0.0
    %1635 = vadd.xlane.f32.xlu0 %v1634
    %v1636 = vpop.xlane.xlu0 %1635
    %v1637 = vsel %vm106, %v1628, 0.0
    %1638 = vadd.xlane.f32.xlu0 %v1637
    %v1639 = vpop.xlane.xlu0 %1638
    %v1640 = vsel %vm1615, %v1630, 0.0
    %1641 = vadd.xlane.f32.xlu0 %v1640
    %v1642 = vpop.xlane.xlu0 %1641
    %v1643 = vlog2.pop %v1633
    %v1644 = vmul.f32 %v1643, 0.6931472
    %v1645 = vlog2.pop %v1636
    %v1646 = vmul.f32 %v1645, 0.6931472
    %v1647 = vlog2.pop %v1639
    %v1648 = vmul.f32 %v1647, 0.6931472
    %v1649 = vlog2.pop %v1642
    %v1650 = vmul.f32 %v1649, 0.6931472
    %v1651 = vsub.f32 %v1619, %v1644
    %v1652 = vsub.f32 %v1620, %v1646
    %v1653 = vsub.f32 %v1621, %v1648
    %v1654 = vsub.f32 %v1622, %v1650
    %1655 = vrot.lane.b32.xlu0 %v581, 32
    %v1656 = vpop.permute.xlu0 %1655
    %vm1658 = vcmask 257024
    %1659 = vst.msk [vmem:[#allocation2] sm:$0xf] %vm1658, %v1656
    %v1662 = vunpack.c.l.s4 1966171168
    %v1663 = vunpack.c.0.s8 %v1662
    %v1664 = vlaneseq
    %v1665 = vshrl.u32 %v1664, 7
    %v1666 = vsub.s32 %v1663, %v1665
    %v1667 = vrot.slane %v1651, %v1666
    %v1668 = vcombine.high %v1667, %v1667
    %v1670 = vunpack.c.l.s4 1966171168
    %v1671 = vunpack.c.0.s8 %v1670
    %v1672 = vlaneseq
    %v1673 = vshrl.u32 %v1672, 7
    %v1674 = vsub.s32 %v1671, %v1673
    %v1675 = vrot.slane %v1667, %v1674
    %v1677 = vunpack.c.l.s4 1966171168
    %v1678 = vunpack.c.0.s8 %v1677
    %v1679 = vlaneseq
    %v1680 = vshrl.u32 %v1679, 7
    %v1681 = vsub.s32 %v1678, %v1680
    %v1682 = vrot.slane %v1668, %v1681
    %v1683 = vcombine.high %v1675, %v1675
    %v1684 = vcombine.high %v1682, %v1682
    %vm1689 = vcmask 155648
    %1690 = vst.msk [vmem:[%s9] sm:$0x1] %vm1689, %v1675
    %1691 = vst.msk [vmem:[%s9 + $0x8] sm:$0x1] %vm1689, %v1682
    %1692 = vst.msk [vmem:[%s9 + $0x10] sm:$0x1] %vm1689, %v1683
    %1693 = vst.msk [vmem:[%s9 + $0x18] sm:$0x1] %vm1689, %v1684
    %1694 = vrot.lane.b32.xlu0 %v733, 32
    %v1695 = vpop.permute.xlu0 %1694
    %s1697 = scalar_lea.vmem [#allocation2], 4
    %1698 = vst.msk [vmem:[%s1697] sm:$0xf] %vm1658, %v1695
    %v1699 = vcombine.high %v1651, %v1651
    %v1701 = vunpack.c.l.s4 1966171168
    %v1702 = vunpack.c.0.s8 %v1701
    %v1703 = vlaneseq
    %v1704 = vshrl.u32 %v1703, 7
    %v1705 = vsub.s32 %v1702, %v1704
    %v1706 = vrot.slane %v1699, %v1705
    %v1707 = vcombine.high %v1706, %v1706
    %v1709 = vunpack.c.l.s4 1966171168
    %v1710 = vunpack.c.0.s8 %v1709
    %v1711 = vlaneseq
    %v1712 = vshrl.u32 %v1711, 7
    %v1713 = vsub.s32 %v1710, %v1712
    %v1714 = vrot.slane %v1706, %v1713
    %v1716 = vunpack.c.l.s4 1966171168
    %v1717 = vunpack.c.0.s8 %v1716
    %v1718 = vlaneseq
    %v1719 = vshrl.u32 %v1718, 7
    %v1720 = vsub.s32 %v1717, %v1719
    %v1721 = vrot.slane %v1707, %v1720
    %v1722 = vcombine.high %v1714, %v1714
    %v1723 = vcombine.high %v1721, %v1721
    %1728 = vst.msk [vmem:[%s9 + $0x1] sm:$0x1] %vm1689, %v1714
    %1729 = vst.msk [vmem:[%s9 + $0x9] sm:$0x1] %vm1689, %v1721
    %1730 = vst.msk [vmem:[%s9 + $0x11] sm:$0x1] %vm1689, %v1722
    %1731 = vst.msk [vmem:[%s9 + $0x19] sm:$0x1] %vm1689, %v1723
    %1732 = vrot.lane.b32.xlu0 %v882, 32
    %v1733 = vpop.permute.xlu0 %1732
    %s1735 = scalar_lea.vmem [#allocation2], 8
    %1736 = vst.msk [vmem:[%s1735] sm:$0xf] %vm1658, %v1733
    %v1739 = vunpack.c.l.s4 1966171168
    %v1740 = vunpack.c.0.s8 %v1739
    %v1741 = vlaneseq
    %v1742 = vshrl.u32 %v1741, 7
    %v1743 = vsub.s32 %v1740, %v1742
    %v1744 = vrot.slane %v1652, %v1743
    %v1745 = vcombine.high %v1744, %v1744
    %v1747 = vunpack.c.l.s4 1966171168
    %v1748 = vunpack.c.0.s8 %v1747
    %v1749 = vlaneseq
    %v1750 = vshrl.u32 %v1749, 7
    %v1751 = vsub.s32 %v1748, %v1750
    %v1752 = vrot.slane %v1744, %v1751
    %v1754 = vunpack.c.l.s4 1966171168
    %v1755 = vunpack.c.0.s8 %v1754
    %v1756 = vlaneseq
    %v1757 = vshrl.u32 %v1756, 7
    %v1758 = vsub.s32 %v1755, %v1757
    %v1759 = vrot.slane %v1745, %v1758
    %v1760 = vcombine.high %v1752, %v1752
    %v1761 = vcombine.high %v1759, %v1759
    %1766 = vst.msk [vmem:[%s9 + $0x2] sm:$0x1] %vm1689, %v1752
    %1767 = vst.msk [vmem:[%s9 + $0xa] sm:$0x1] %vm1689, %v1759
    %1768 = vst.msk [vmem:[%s9 + $0x12] sm:$0x1] %vm1689, %v1760
    %1769 = vst.msk [vmem:[%s9 + $0x1a] sm:$0x1] %vm1689, %v1761
    %1770 = vrot.lane.b32.xlu0 %v1034, 32
    %v1771 = vpop.permute.xlu0 %1770
    %s1773 = scalar_lea.vmem [#allocation2], 12
    %1774 = vst.msk [vmem:[%s1773] sm:$0xf] %vm1658, %v1771
    %v1775 = vcombine.high %v1652, %v1652
    %v1777 = vunpack.c.l.s4 1966171168
    %v1778 = vunpack.c.0.s8 %v1777
    %v1779 = vlaneseq
    %v1780 = vshrl.u32 %v1779, 7
    %v1781 = vsub.s32 %v1778, %v1780
    %v1782 = vrot.slane %v1775, %v1781
    %v1783 = vcombine.high %v1782, %v1782
    %v1785 = vunpack.c.l.s4 1966171168
    %v1786 = vunpack.c.0.s8 %v1785
    %v1787 = vlaneseq
    %v1788 = vshrl.u32 %v1787, 7
    %v1789 = vsub.s32 %v1786, %v1788
    %v1790 = vrot.slane %v1782, %v1789
    %v1792 = vunpack.c.l.s4 1966171168
    %v1793 = vunpack.c.0.s8 %v1792
    %v1794 = vlaneseq
    %v1795 = vshrl.u32 %v1794, 7
    %v1796 = vsub.s32 %v1793, %v1795
    %v1797 = vrot.slane %v1783, %v1796
    %v1798 = vcombine.high %v1790, %v1790
    %v1799 = vcombine.high %v1797, %v1797
    %1804 = vst.msk [vmem:[%s9 + $0x3] sm:$0x1] %vm1689, %v1790
    %1805 = vst.msk [vmem:[%s9 + $0xb] sm:$0x1] %vm1689, %v1797
    %1806 = vst.msk [vmem:[%s9 + $0x13] sm:$0x1] %vm1689, %v1798
    %1807 = vst.msk [vmem:[%s9 + $0x1b] sm:$0x1] %vm1689, %v1799
    %1808 = vrot.lane.b32.xlu0 %v1183, 32
    %v1809 = vpop.permute.xlu0 %1808
    %s1811 = scalar_lea.vmem [#allocation2], 16
    %1812 = vst.msk [vmem:[%s1811] sm:$0xf] %vm1658, %v1809
    %v1815 = vunpack.c.l.s4 1966171168
    %v1816 = vunpack.c.0.s8 %v1815
    %v1817 = vlaneseq
    %v1818 = vshrl.u32 %v1817, 7
    %v1819 = vsub.s32 %v1816, %v1818
    %v1820 = vrot.slane %v1653, %v1819
    %v1821 = vcombine.high %v1820, %v1820
    %v1823 = vunpack.c.l.s4 1966171168
    %v1824 = vunpack.c.0.s8 %v1823
    %v1825 = vlaneseq
    %v1826 = vshrl.u32 %v1825, 7
    %v1827 = vsub.s32 %v1824, %v1826
    %v1828 = vrot.slane %v1820, %v1827
    %v1830 = vunpack.c.l.s4 1966171168
    %v1831 = vunpack.c.0.s8 %v1830
    %v1832 = vlaneseq
    %v1833 = vshrl.u32 %v1832, 7
    %v1834 = vsub.s32 %v1831, %v1833
    %v1835 = vrot.slane %v1821, %v1834
    %v1836 = vcombine.high %v1828, %v1828
    %v1837 = vcombine.high %v1835, %v1835
    %1842 = vst.msk [vmem:[%s9 + $0x4] sm:$0x1] %vm1689, %v1828
    %1843 = vst.msk [vmem:[%s9 + $0xc] sm:$0x1] %vm1689, %v1835
    %1844 = vst.msk [vmem:[%s9 + $0x14] sm:$0x1] %vm1689, %v1836
    %1845 = vst.msk [vmem:[%s9 + $0x1c] sm:$0x1] %vm1689, %v1837
    %1846 = vrot.lane.b32.xlu0 %v1335, 32
    %v1847 = vpop.permute.xlu0 %1846
    %s1849 = scalar_lea.vmem [#allocation2], 20
    %1850 = vst.msk [vmem:[%s1849] sm:$0xf] %vm1658, %v1847
    %v1851 = vcombine.high %v1653, %v1653
    %v1853 = vunpack.c.l.s4 1966171168
    %v1854 = vunpack.c.0.s8 %v1853
    %v1855 = vlaneseq
    %v1856 = vshrl.u32 %v1855, 7
    %v1857 = vsub.s32 %v1854, %v1856
    %v1858 = vrot.slane %v1851, %v1857
    %v1859 = vcombine.high %v1858, %v1858
    %v1861 = vunpack.c.l.s4 1966171168
    %v1862 = vunpack.c.0.s8 %v1861
    %v1863 = vlaneseq
    %v1864 = vshrl.u32 %v1863, 7
    %v1865 = vsub.s32 %v1862, %v1864
    %v1866 = vrot.slane %v1858, %v1865
    %v1868 = vunpack.c.l.s4 1966171168
    %v1869 = vunpack.c.0.s8 %v1868
    %v1870 = vlaneseq
    %v1871 = vshrl.u32 %v1870, 7
    %v1872 = vsub.s32 %v1869, %v1871
    %v1873 = vrot.slane %v1859, %v1872
    %v1874 = vcombine.high %v1866, %v1866
    %v1875 = vcombine.high %v1873, %v1873
    %1880 = vst.msk [vmem:[%s9 + $0x5] sm:$0x1] %vm1689, %v1866
    %1881 = vst.msk [vmem:[%s9 + $0xd] sm:$0x1] %vm1689, %v1873
    %1882 = vst.msk [vmem:[%s9 + $0x15] sm:$0x1] %vm1689, %v1874
    %1883 = vst.msk [vmem:[%s9 + $0x1d] sm:$0x1] %vm1689, %v1875
    %s1885 = scalar_lea.vmem [#allocation2], 24
    %1886 = vst.msk [vmem:[%s1885] sm:$0xf] %vm1658, %v1512
    %v1889 = vunpack.c.l.s4 1966171168
    %v1890 = vunpack.c.0.s8 %v1889
    %v1891 = vlaneseq
    %v1892 = vshrl.u32 %v1891, 7
    %v1893 = vsub.s32 %v1890, %v1892
    %v1894 = vrot.slane %v1654, %v1893
    %v1895 = vcombine.high %v1894, %v1894
    %v1897 = vunpack.c.l.s4 1966171168
    %v1898 = vunpack.c.0.s8 %v1897
    %v1899 = vlaneseq
    %v1900 = vshrl.u32 %v1899, 7
    %v1901 = vsub.s32 %v1898, %v1900
    %v1902 = vrot.slane %v1894, %v1901
    %v1904 = vunpack.c.l.s4 1966171168
    %v1905 = vunpack.c.0.s8 %v1904
    %v1906 = vlaneseq
    %v1907 = vshrl.u32 %v1906, 7
    %v1908 = vsub.s32 %v1905, %v1907
    %v1909 = vrot.slane %v1895, %v1908
    %v1910 = vcombine.high %v1902, %v1902
    %v1911 = vcombine.high %v1909, %v1909
    %1916 = vst.msk [vmem:[%s9 + $0x6] sm:$0x1] %vm1689, %v1902
    %1917 = vst.msk [vmem:[%s9 + $0xe] sm:$0x1] %vm1689, %v1909
    %1918 = vst.msk [vmem:[%s9 + $0x16] sm:$0x1] %vm1689, %v1910
    %1919 = vst.msk [vmem:[%s9 + $0x1e] sm:$0x1] %vm1689, %v1911
    // Predicated region
    $region38: #{show_tell_forward.1} parent=1 // pred_check
      _
    $region39: #{show_tell_forward.1} parent=1 // pred_check_branch
      %1921 = sbr.rel (0) target = $region41
    $region40: #{show_tell_forward.1} parent=1 // pred_region
      _
    $region41: #{show_tell_forward.1} parent=1 // pred_fallthru
      _
    // Predicated region
    $region42: #{show_tell_forward.1} parent=1 // pred_check
      _
    $region43: #{show_tell_forward.1} parent=1 // pred_check_branch
      %1923 = sbr.rel (0) target = $region45
    $region44: #{show_tell_forward.1} parent=1 // pred_region
      %s1925 = ssub.s32 448, 448
      %1926 = vsyncadd [#allocation3], %s1925
      %s1927 = sshll.u32 [#allocation2], 4
      %s1928 = int_to_ptr.vmem [resolvable:$true] %s1927
      %1933 = dma.vmem_to_hbm [thread:$0]  %s1928, 448, %s10, [#allocation3], 64, 64, 4
    $region45: #{show_tell_forward.1} parent=1 // pred_fallthru
      _
    // Predicated region
    $region46: #{show_tell_forward.1} parent=1 // pred_check
      _
    $region47: #{show_tell_forward.1} parent=1 // pred_check_branch
      %1935 = sbr.rel (0) target = $region49
    $region48: #{show_tell_forward.1} parent=1 // pred_region
      _
    $region49: #{show_tell_forward.1} parent=1 // pred_fallthru
      _
    // Predicated region
    $region50: #{show_tell_forward.1} parent=1 // pred_check
      _
    $region51: #{show_tell_forward.1} parent=1 // pred_check_branch
      %1937 = sbr.rel (0) target = $region53
    $region52: #{show_tell_forward.1} parent=1 // pred_region
      %1938 = dma.done [#allocation3], 448
    $region53: #{show_tell_forward.1} parent=1 // pred_fallthru
      _
    %1939 = vsyncpa [#allocation3], 1

</llo_original>
